<compile_context>
chip_gen: v6e
topology: v6e:2x2x1
jax: 0.10.0
libtpu: 0.0.40
codegen_flags: <defaults>
</compile_context>

<pallas_src>
import jax
import jax.numpy as jnp
from jax.experimental import pallas as pl
from jax.experimental.pallas import tpu as pltpu

D_IN = 1000
D_HID = 512
D_OUT = 3
D_OUT_PAD = 128      # lane-dense output width (unmasked vst); wrapper slices to 3
TILE_B_MAX = 1024    # per measured tiling data, ~86-90% of HBM roofline


def mlp_kernel(x_ref, w1_ref, b1_ref, w2_ref, b2_ref, o_ref):
    # Cast the streamed f32 x tile to bf16 in VMEM (no wrapper-side HBM pass).
    x = x_ref[...].astype(jnp.bfloat16)
    # Linear(1000->512): bf16 operands, f32 accumulate on the MXU (K=1000 is
    # handled/padded internally by Mosaic).
    h = jnp.dot(x, w1_ref[...], preferred_element_type=jnp.float32)
    # Bias + ReLU in f32 on the VPU.
    h = jnp.maximum(h + b1_ref[...], 0.0)
    # Dropout(0.5): identity at inference time.
    # TODO(synk): training-mode dropout (pltpu.prng_random_bits mask, 2.0 scale) not emitted.
    # Linear(512->3), padded to 128 output lanes (extra columns of w2/b2 are zeros).
    z = jnp.dot(h.astype(jnp.bfloat16), w2_ref[...],
                preferred_element_type=jnp.float32) + b2_ref[...]
    # Sigmoid: exp and approx reciprocal both go to the EUP slot.
    o_ref[...] = pl.reciprocal(1.0 + jnp.exp(-z), approx=True).astype(o_ref.dtype)


def prepare_params(w1, b1, w2, b2):
    """One-time weight preprocessing (hoisted out of the per-call path).

    w1: [1000, 512], b1: [1, 512], w2: [512, 3], b2: [1, 3] (weights stored
    pre-transposed as [in, out] relative to torch's [out, in]).
    """
    w1_p = w1.astype(jnp.bfloat16)                                       # [1000, 512]
    b1_f = b1.astype(jnp.float32)                                        # [1, 512]
    w2_p = jnp.pad(w2, ((0, 0), (0, D_OUT_PAD - D_OUT))).astype(jnp.bfloat16)  # [512, 128]
    b2_p = jnp.pad(b2, ((0, 0), (0, D_OUT_PAD - D_OUT))).astype(jnp.float32)   # [1, 128]
    return w1_p, b1_f, w2_p, b2_p


def _pick_batch_tile(B):
    if B <= 16:
        return B  # single block == full array dim (always layout-legal)
    # >=2 grid programs whenever B > tile (v7x megacore), bounded pad waste.
    num_tiles = max(2, pl.cdiv(B, TILE_B_MAX))
    tb = ((pl.cdiv(B, num_tiles) + 15) // 16) * 16   # multiple of 16 sublanes
    return min(tb, TILE_B_MAX)


def classification_forward(x, w1_p, b1_f, w2_p, b2_p):
    """x: [B, 1000] f32; params already preprocessed via prepare_params()."""
    B = x.shape[0]
    tb = _pick_batch_tile(B)
    grid_b = pl.cdiv(B, tb)

    out = pl.pallas_call(
        mlp_kernel,
        out_shape=jax.ShapeDtypeStruct((B, D_OUT_PAD), jnp.bfloat16),
        grid=(grid_b,),
        in_specs=[
            pl.BlockSpec((tb, D_IN), lambda i: (i, 0)),          # x streams (raw f32)
            pl.BlockSpec((D_IN, D_HID), lambda i: (0, 0)),       # w1 resident
            pl.BlockSpec((1, D_HID), lambda i: (0, 0)),          # b1 resident
            pl.BlockSpec((D_HID, D_OUT_PAD), lambda i: (0, 0)),  # w2 resident
            pl.BlockSpec((1, D_OUT_PAD), lambda i: (0, 0)),      # b2 resident
        ],
        out_specs=pl.BlockSpec((tb, D_OUT_PAD), lambda i: (i, 0)),
        compiler_params=pltpu.CompilerParams(
            dimension_semantics=("parallel",),
            # Only needed for big f32 x tiles vs v5e's 16 MiB scoped default.
            vmem_limit_bytes=(64 << 20) if tb >= 1024 else None,
        ),
    )(x, w1_p, b1_f, w2_p, b2_p)

    # Garbage rows from a ragged last block never get written (masked store),
    # and the lane pad is dropped here. Cast the tiny result back to f32.
    return out[:, :D_OUT].astype(jnp.float32)


def init_params(key):
    # Deterministic PyTorch-style init: U(-1/sqrt(fan_in), 1/sqrt(fan_in)).
    k1, k2, k3, k4 = jax.random.split(key, 4)
    bound1 = 1.0 / jnp.sqrt(jnp.float32(D_IN))
    bound2 = 1.0 / jnp.sqrt(jnp.float32(D_HID))
    w1 = jax.random.uniform(k1, (D_IN, D_HID), jnp.float32, -bound1, bound1)
    b1 = jax.random.uniform(k2, (1, D_HID), jnp.float32, -bound1, bound1)
    w2 = jax.random.uniform(k3, (D_HID, D_OUT), jnp.float32, -bound2, bound2)
    b2 = jax.random.uniform(k4, (1, D_OUT), jnp.float32, -bound2, bound2)
    return w1, b1, w2, b2


if __name__ == "__main__":
    key = jax.random.PRNGKey(0)
    kx, kp = jax.random.split(key)
    B = 8
    x = jax.random.normal(kx, (B, D_IN), jnp.float32)
    w1, b1, w2, b2 = init_params(kp)

    # One-time weight preprocessing (would be cached across forward calls).
    w1_p, b1_f, w2_p, b2_p = prepare_params(w1, b1, w2, b2)

    out = classification_forward(x, w1_p, b1_f, w2_p, b2_p)
    out = jax.block_until_ready(out)

    # Sanity check vs plain-JAX f32 reference (eval-mode dropout = identity).
    # bf16 matmuls + bf16 output + approx reciprocal => loosened tolerance.
    ref = 1.0 / (1.0 + jnp.exp(-(jnp.maximum(x @ w1 + b1, 0.0) @ w2 + b2)))
    assert out.shape == (B, D_OUT)
    assert jnp.allclose(out, ref, atol=2.5e-2, rtol=2.5e-2), float(
        jnp.max(jnp.abs(out - ref)))
    print("KERNEL_OK")
</pallas_src>

<mosaic_0001>
module attributes {stable_mosaic.version = 11 : i64} {
  func.func @mlp_kernel(%arg0: i32, %arg1: memref<8x1000xf32, #tpu.memory_space<vmem>>, %arg2: memref<1000x512xbf16, #tpu.memory_space<vmem>>, %arg3: memref<1x512xf32, #tpu.memory_space<vmem>>, %arg4: memref<512x128xbf16, #tpu.memory_space<vmem>>, %arg5: memref<1x128xf32, #tpu.memory_space<vmem>>, %arg6: memref<8x128xbf16, #tpu.memory_space<vmem>>) attributes {dimension_semantics = [#tpu.dimension_semantics<parallel>], iteration_bounds = array<i64: 1>, scalar_prefetch = 0 : i64, scratch_operands = 0 : i64, tpu.core_type = #tpu.core_type<tc>, window_params = [{transform_indices = @transform_0, window_bounds = array<i64: 8, 1000>}, {pipeline_mode = #tpu.pipeline_mode<synchronous>, transform_indices = @transform_1, window_bounds = array<i64: 1000, 512>}, {pipeline_mode = #tpu.pipeline_mode<synchronous>, transform_indices = @transform_2, window_bounds = array<i64: 1, 512>}, {pipeline_mode = #tpu.pipeline_mode<synchronous>, transform_indices = @transform_3, window_bounds = array<i64: 512, 128>}, {pipeline_mode = #tpu.pipeline_mode<synchronous>, transform_indices = @transform_4, window_bounds = array<i64: 1, 128>}, {transform_indices = @transform_5, window_bounds = array<i64: 8, 128>}]} {
    %c0 = arith.constant 0 : index
    %c0_0 = arith.constant 0 : index
    %0 = vector.load %arg1[%c0, %c0_0] : memref<8x1000xf32, #tpu.memory_space<vmem>>, vector<8x1000xf32>
    %1 = arith.truncf %0 : vector<8x1000xf32> to vector<8x1000xbf16>
    %c0_1 = arith.constant 0 : index
    %c0_2 = arith.constant 0 : index
    %2 = vector.load %arg2[%c0_1, %c0_2] : memref<1000x512xbf16, #tpu.memory_space<vmem>>, vector<1000x512xbf16>
    %cst = arith.constant dense<0.000000e+00> : vector<8x512xf32>
    %3 = tpu.matmul %1, %2, %cst {dimension_numbers = #tpu.dot_dimension_numbers<[1], [0], [0], [1], [0, 0, 1, 1], [], []>} : vector<8x1000xbf16>, vector<1000x512xbf16>, vector<8x512xf32> -> vector<8x512xf32>
    %c0_3 = arith.constant 0 : index
    %c0_4 = arith.constant 0 : index
    %4 = vector.load %arg3[%c0_3, %c0_4] : memref<1x512xf32, #tpu.memory_space<vmem>>, vector<1x512xf32>
    %5 = vector.broadcast %4 : vector<1x512xf32> to vector<8x512xf32>
    %6 = arith.addf %3, %5 : vector<8x512xf32>
    %cst_5 = arith.constant 0.000000e+00 : f32
    %7 = vector.broadcast %cst_5 : f32 to vector<8x512xf32>
    %8 = arith.maximumf %6, %7 : vector<8x512xf32>
    %9 = arith.truncf %8 : vector<8x512xf32> to vector<8x512xbf16>
    %c0_6 = arith.constant 0 : index
    %c0_7 = arith.constant 0 : index
    %10 = vector.load %arg4[%c0_6, %c0_7] : memref<512x128xbf16, #tpu.memory_space<vmem>>, vector<512x128xbf16>
    %cst_8 = arith.constant dense<0.000000e+00> : vector<8x128xf32>
    %11 = tpu.matmul %9, %10, %cst_8 {dimension_numbers = #tpu.dot_dimension_numbers<[1], [0], [0], [1], [0, 0, 1, 1], [], []>} : vector<8x512xbf16>, vector<512x128xbf16>, vector<8x128xf32> -> vector<8x128xf32>
    %c0_9 = arith.constant 0 : index
    %c0_10 = arith.constant 0 : index
    %12 = vector.load %arg5[%c0_9, %c0_10] : memref<1x128xf32, #tpu.memory_space<vmem>>, vector<1x128xf32>
    %13 = vector.broadcast %12 : vector<1x128xf32> to vector<8x128xf32>
    %14 = arith.addf %11, %13 : vector<8x128xf32>
    %cst_11 = arith.constant 0.000000e+00 : f32
    %15 = vector.broadcast %cst_11 : f32 to vector<8x128xf32>
    %16 = arith.subf %15, %14 : vector<8x128xf32>
    %17 = math.exp %16 : vector<8x128xf32>
    %cst_12 = arith.constant 1.000000e+00 : f32
    %18 = vector.broadcast %cst_12 : f32 to vector<8x128xf32>
    %19 = arith.addf %18, %17 : vector<8x128xf32>
    %20 = tpu.reciprocal %19 {approx = true} : vector<8x128xf32> -> vector<8x128xf32>
    %21 = arith.truncf %20 : vector<8x128xf32> to vector<8x128xbf16>
    %c0_13 = arith.constant 0 : index
    %c0_14 = arith.constant 0 : index
    %22 = vector.load %arg6[%c0_13, %c0_14] : memref<8x128xbf16, #tpu.memory_space<vmem>>, vector<8x128xbf16>
    tpu.vector_store %arg6[%c0_13, %c0_14], %21 {strides = array<i32>} : memref<8x128xbf16, #tpu.memory_space<vmem>>, vector<8x128xbf16>,
    return
  }
  func.func @transform_0(%arg0: i32) -> (i32, i32) {
    %c0_i32 = arith.constant 0 : i32
    %c0_i32_0 = arith.constant 0 : i32
    return %arg0, %c0_i32 : i32, i32
  }
  func.func @transform_1(%arg0: i32) -> (i32, i32) {
    %c0_i32 = arith.constant 0 : i32
    %c0_i32_0 = arith.constant 0 : i32
    %c0_i32_1 = arith.constant 0 : i32
    return %c0_i32, %c0_i32_0 : i32, i32
  }
  func.func @transform_2(%arg0: i32) -> (i32, i32) {
    %c0_i32 = arith.constant 0 : i32
    %c0_i32_0 = arith.constant 0 : i32
    %c0_i32_1 = arith.constant 0 : i32
    return %c0_i32, %c0_i32_0 : i32, i32
  }
  func.func @transform_3(%arg0: i32) -> (i32, i32) {
    %c0_i32 = arith.constant 0 : i32
    %c0_i32_0 = arith.constant 0 : i32
    %c0_i32_1 = arith.constant 0 : i32
    return %c0_i32, %c0_i32_0 : i32, i32
  }
  func.func @transform_4(%arg0: i32) -> (i32, i32) {
    %c0_i32 = arith.constant 0 : i32
    %c0_i32_0 = arith.constant 0 : i32
    %c0_i32_1 = arith.constant 0 : i32
    return %c0_i32, %c0_i32_0 : i32, i32
  }
  func.func @transform_5(%arg0: i32) -> (i32, i32) {
    %c0_i32 = arith.constant 0 : i32
    %c0_i32_0 = arith.constant 0 : i32
    return %arg0, %c0_i32 : i32, i32
  }
}

</mosaic_0001>

<llo_original>
// kernel: tpu_custom_call.1
$region0: #{tpu_custom_call.1}
  #allocation0 [shape = 'u32[]', space=smem, size = 0x4, offset = 0x4, fixed_abs, tag = 'smem constant byte address 0x4 - core index']
  #allocation1 [shape = 'u32[144,128]{1,0:T(1,128)}', space=vmem, size = 0x12000, scoped, tag = 'internal scratch']
  %s0 = inlined_call_operand.hbm [shape: f32[8,1000], index: 0, kind: input, shape index: {}]
  %s1 = inlined_call_operand.hbm [shape: bf16[1000,512], index: 1, kind: input, shape index: {}]
  %s2 = inlined_call_operand.hbm [shape: f32[1,512], index: 2, kind: input, shape index: {}]
  %s3 = inlined_call_operand.hbm [shape: bf16[512,128], index: 3, kind: input, shape index: {}]
  %s4 = inlined_call_operand.vmem [shape: f32[1,128], index: 4, kind: input, shape index: {}]
  %s5 = inlined_call_operand.hbm [shape: bf16[8,128], index: 5, kind: output, shape index: {}]
  %s6 = sld [smem:[#allocation0]]
  $region46: #{tpu_custom_call.1} parent=0
    _
  %s8 = ssub.s32 1, %s6
  %s9 = scalar_select 0, %s8, %s6
  $region1: #{tpu_custom_call.1} parent=0
    #allocation2 [shape = 'u8[32768]{0}', space=vmem, size = 0x8000, scoped, tag = 'input window, operand 0, single buffered']
    #allocation3 [shape = 's32[1]{0}', space=sflag, size = 0x4, scoped, tag = 'scoped memory for tpu_custom_call.1']
    #allocation4 [shape = 's32[1]{0}', space=sflag, size = 0x4, scoped, tag = 'scoped memory for tpu_custom_call.1']
    #allocation5 [shape = 'u8[1024000]{0}', space=vmem, size = 0xfa000, scoped, tag = 'input window, operand 1, single buffered']
    #allocation6 [shape = 's32[1]{0}', space=sflag, size = 0x4, scoped, tag = 'scoped memory for tpu_custom_call.1']
    #allocation7 [shape = 'u8[2048]{0}', space=vmem, size = 0x800, scoped, tag = 'input window, operand 2, single buffered']
    #allocation8 [shape = 'u8[131072]{0}', space=vmem, size = 0x20000, scoped, tag = 'input window, operand 3, single buffered']
    #allocation9 [shape = 's32[1]{0}', space=sflag, size = 0x4, scoped, tag = 'scoped memory for tpu_custom_call.1']
    #allocation10 [shape = 'u8[2048]{0}', space=vmem, size = 0x800, scoped, tag = 'output window, operand 0, single buffered']
    %10 = vsyncpa [#allocation3], 0
    %11 = vsyncpa [#allocation6], 0
    %12 = vsyncpa [#allocation9], 0
    %13 = vsyncpa [#allocation4], 0
    // Predicated region
    $region2: #{tpu_custom_call.1} parent=1 // pred_check
      _
    $region3: #{tpu_custom_call.1} parent=1 // pred_check_branch
      %15 = sbr.rel (0) target = $region5
    $region4: #{tpu_custom_call.1} parent=1 // pred_region
      %s17 = ssub.s32 1024, 1024
      %18 = vsyncadd [#allocation3], %s17
      %s20 = sshll.u32 [#allocation2], 4
      %s21 = int_to_ptr.vmem [resolvable:$true] %s20
      %23 = dma.hbm_to_vmem [thread:$0]  %s0, 1024, %s21, [#allocation3]
    $region5: #{tpu_custom_call.1} parent=1 // pred_fallthru
      _
    // Predicated region
    $region6: #{tpu_custom_call.1} parent=1 // pred_check
      _
    $region7: #{tpu_custom_call.1} parent=1 // pred_check_branch
      %25 = sbr.rel (0) target = $region9
    $region8: #{tpu_custom_call.1} parent=1 // pred_region
      %s27 = ssub.s32 32000, 32000
      %28 = vsyncadd [#allocation6], %s27
      %s29 = sshll.u32 [#allocation5], 4
      %s30 = int_to_ptr.vmem [resolvable:$true] %s29
      %35 = dma.hbm_to_vmem [thread:$0]  %s1, 32000, %s30, [#allocation6], 256, 256, 16
    $region9: #{tpu_custom_call.1} parent=1 // pred_fallthru
      _
    // Predicated region
    $region10: #{tpu_custom_call.1} parent=1 // pred_check
      _
    $region11: #{tpu_custom_call.1} parent=1 // pred_check_branch
      %37 = sbr.rel (0) target = $region13
    $region12: #{tpu_custom_call.1} parent=1 // pred_region
      %s39 = ssub.s32 64, 64
      %40 = vsyncadd [#allocation6], %s39
      %s42 = sshll.u32 [#allocation7], 4
      %s43 = int_to_ptr.vmem [resolvable:$true] %s42
      %45 = dma.hbm_to_vmem [thread:$0]  %s2, 64, %s43, [#allocation6]
    $region13: #{tpu_custom_call.1} parent=1 // pred_fallthru
      _
    // Predicated region
    $region14: #{tpu_custom_call.1} parent=1 // pred_check
      _
    $region15: #{tpu_custom_call.1} parent=1 // pred_check_branch
      %47 = sbr.rel (0) target = $region17
    $region16: #{tpu_custom_call.1} parent=1 // pred_region
      %s49 = ssub.s32 4096, 4096
      %50 = vsyncadd [#allocation9], %s49
      %s51 = sshll.u32 [#allocation8], 4
      %s52 = int_to_ptr.vmem [resolvable:$true] %s51
      %57 = dma.hbm_to_vmem [thread:$0]  %s3, 4096, %s52, [#allocation9], 64, 64, 4
    $region17: #{tpu_custom_call.1} parent=1 // pred_fallthru
      _
    // Predicated region
    $region18: #{tpu_custom_call.1} parent=1 // pred_check
      _
    $region19: #{tpu_custom_call.1} parent=1 // pred_check_branch
      %59 = sbr.rel (0) target = $region21
    $region20: #{tpu_custom_call.1} parent=1 // pred_region
      _
    $region21: #{tpu_custom_call.1} parent=1 // pred_fallthru
      _
    // Predicated region
    $region22: #{tpu_custom_call.1} parent=1 // pred_check
      _
    $region23: #{tpu_custom_call.1} parent=1 // pred_check_branch
      %61 = sbr.rel (0) target = $region25
    $region24: #{tpu_custom_call.1} parent=1 // pred_region
      %62 = dma.done [#allocation3], 1024
    $region25: #{tpu_custom_call.1} parent=1 // pred_fallthru
      _
    // Predicated region
    $region26: #{tpu_custom_call.1} parent=1 // pred_check
      _
    $region27: #{tpu_custom_call.1} parent=1 // pred_check_branch
      %64 = sbr.rel (0) target = $region29
    $region28: #{tpu_custom_call.1} parent=1 // pred_region
      %65 = dma.done [#allocation6], 32000
    $region29: #{tpu_custom_call.1} parent=1 // pred_fallthru
      _
    // Predicated region
    $region30: #{tpu_custom_call.1} parent=1 // pred_check
      _
    $region31: #{tpu_custom_call.1} parent=1 // pred_check_branch
      %67 = sbr.rel (0) target = $region33
    $region32: #{tpu_custom_call.1} parent=1 // pred_region
      %68 = dma.done [#allocation6], 64
    $region33: #{tpu_custom_call.1} parent=1 // pred_fallthru
      _
    // Predicated region
    $region34: #{tpu_custom_call.1} parent=1 // pred_check
      _
    $region35: #{tpu_custom_call.1} parent=1 // pred_check_branch
      %70 = sbr.rel (0) target = $region37
    $region36: #{tpu_custom_call.1} parent=1 // pred_region
      %71 = dma.done [#allocation9], 4096
    $region37: #{tpu_custom_call.1} parent=1 // pred_fallthru
      _
    %v73 = vld [vmem:[#allocation2] sm:$0xff]
    %v74 = vld [vmem:[#allocation2 + $0x8] sm:$0xff]
    %v75 = vld [vmem:[#allocation2 + $0x10] sm:$0xff]
    %v76 = vld [vmem:[#allocation2 + $0x18] sm:$0xff]
    %v77 = vld [vmem:[#allocation2 + $0x20] sm:$0xff]
    %v78 = vld [vmem:[#allocation2 + $0x28] sm:$0xff]
    %v79 = vld [vmem:[#allocation2 + $0x30] sm:$0xff]
    %v80 = vld [vmem:[#allocation2 + $0x38] sm:$0xff]
    %v81 = vpack.c.bf16 %v73, %v73
    %v82 = vpack.c.bf16 %v74, %v74
    %v83 = vpack.c.bf16 %v75, %v75
    %v84 = vpack.c.bf16 %v76, %v76
    %v85 = vpack.c.bf16 %v77, %v77
    %v86 = vpack.c.bf16 %v78, %v78
    %v87 = vpack.c.bf16 %v79, %v79
    %v88 = vpack.c.bf16 %v80, %v80
    %v89 = vld [vmem:[#allocation5] sm:$0xff]
    %v90 = vld [vmem:[#allocation5 + $0x8] sm:$0xff]
    %v91 = vld [vmem:[#allocation5 + $0x10] sm:$0xff]
    %v92 = vld [vmem:[#allocation5 + $0x18] sm:$0xff]
    %v93 = vld [vmem:[#allocation5 + $0x20] sm:$0xff]
    %v94 = vld [vmem:[#allocation5 + $0x28] sm:$0xff]
    %v95 = vld [vmem:[#allocation5 + $0x30] sm:$0xff]
    %v96 = vld [vmem:[#allocation5 + $0x38] sm:$0xff]
    %v97 = vld [vmem:[#allocation5 + $0x40] sm:$0xff]
    %v98 = vld [vmem:[#allocation5 + $0x48] sm:$0xff]
    %v99 = vld [vmem:[#allocation5 + $0x50] sm:$0xff]
    %v100 = vld [vmem:[#allocation5 + $0x58] sm:$0xff]
    %v101 = vld [vmem:[#allocation5 + $0x60] sm:$0xff]
    %v102 = vld [vmem:[#allocation5 + $0x68] sm:$0xff]
    %v103 = vld [vmem:[#allocation5 + $0x70] sm:$0xff]
    %v104 = vld [vmem:[#allocation5 + $0x78] sm:$0xff]
    %v105 = vld [vmem:[#allocation5 + $0x80] sm:$0xff]
    %v106 = vld [vmem:[#allocation5 + $0x88] sm:$0xff]
    %v107 = vld [vmem:[#allocation5 + $0x90] sm:$0xff]
    %v108 = vld [vmem:[#allocation5 + $0x98] sm:$0xff]
    %v109 = vld [vmem:[#allocation5 + $0xa0] sm:$0xff]
    %v110 = vld [vmem:[#allocation5 + $0xa8] sm:$0xff]
    %v111 = vld [vmem:[#allocation5 + $0xb0] sm:$0xff]
    %v112 = vld [vmem:[#allocation5 + $0xb8] sm:$0xff]
    %v113 = vld [vmem:[#allocation5 + $0xc0] sm:$0xff]
    %v114 = vld [vmem:[#allocation5 + $0xc8] sm:$0xff]
    %v115 = vld [vmem:[#allocation5 + $0xd0] sm:$0xff]
    %v116 = vld [vmem:[#allocation5 + $0xd8] sm:$0xff]
    %v117 = vld [vmem:[#allocation5 + $0xe0] sm:$0xff]
    %v118 = vld [vmem:[#allocation5 + $0xe8] sm:$0xff]
    %v119 = vld [vmem:[#allocation5 + $0xf0] sm:$0xff]
    %v120 = vld [vmem:[#allocation5 + $0xf8] sm:$0xff]
    %v121 = vld [vmem:[#allocation5 + $0x100] sm:$0xff]
    %v122 = vld [vmem:[#allocation5 + $0x108] sm:$0xff]
    %v123 = vld [vmem:[#allocation5 + $0x110] sm:$0xff]
    %v124 = vld [vmem:[#allocation5 + $0x118] sm:$0xff]
    %v125 = vld [vmem:[#allocation5 + $0x120] sm:$0xff]
    %v126 = vld [vmem:[#allocation5 + $0x128] sm:$0xff]
    %v127 = vld [vmem:[#allocation5 + $0x130] sm:$0xff]
    %v128 = vld [vmem:[#allocation5 + $0x138] sm:$0xff]
    %v129 = vld [vmem:[#allocation5 + $0x140] sm:$0xff]
    %v130 = vld [vmem:[#allocation5 + $0x148] sm:$0xff]
    %v131 = vld [vmem:[#allocation5 + $0x150] sm:$0xff]
    %v132 = vld [vmem:[#allocation5 + $0x158] sm:$0xff]
    %v133 = vld [vmem:[#allocation5 + $0x160] sm:$0xff]
    %v134 = vld [vmem:[#allocation5 + $0x168] sm:$0xff]
    %v135 = vld [vmem:[#allocation5 + $0x170] sm:$0xff]
    %v136 = vld [vmem:[#allocation5 + $0x178] sm:$0xff]
    %v137 = vld [vmem:[#allocation5 + $0x180] sm:$0xff]
    %v138 = vld [vmem:[#allocation5 + $0x188] sm:$0xff]
    %v139 = vld [vmem:[#allocation5 + $0x190] sm:$0xff]
    %v140 = vld [vmem:[#allocation5 + $0x198] sm:$0xff]
    %v141 = vld [vmem:[#allocation5 + $0x1a0] sm:$0xff]
    %v142 = vld [vmem:[#allocation5 + $0x1a8] sm:$0xff]
    %v143 = vld [vmem:[#allocation5 + $0x1b0] sm:$0xff]
    %v144 = vld [vmem:[#allocation5 + $0x1b8] sm:$0xff]
    %v145 = vld [vmem:[#allocation5 + $0x1c0] sm:$0xff]
    %v146 = vld [vmem:[#allocation5 + $0x1c8] sm:$0xff]
    %v147 = vld [vmem:[#allocation5 + $0x1d0] sm:$0xff]
    %v148 = vld [vmem:[#allocation5 + $0x1d8] sm:$0xff]
    %v149 = vld [vmem:[#allocation5 + $0x1e0] sm:$0xff]
    %v150 = vld [vmem:[#allocation5 + $0x1e8] sm:$0xff]
    %v151 = vld [vmem:[#allocation5 + $0x1f0] sm:$0xff]
    %v152 = vld [vmem:[#allocation5 + $0x1f8] sm:$0xff]
    %v153 = vld [vmem:[#allocation5 + $0x200] sm:$0xff]
    %v154 = vld [vmem:[#allocation5 + $0x208] sm:$0xff]
    %v155 = vld [vmem:[#allocation5 + $0x210] sm:$0xff]
    %v156 = vld [vmem:[#allocation5 + $0x218] sm:$0xff]
    %v157 = vld [vmem:[#allocation5 + $0x220] sm:$0xff]
    %v158 = vld [vmem:[#allocation5 + $0x228] sm:$0xff]
    %v159 = vld [vmem:[#allocation5 + $0x230] sm:$0xff]
    %v160 = vld [vmem:[#allocation5 + $0x238] sm:$0xff]
    %v161 = vld [vmem:[#allocation5 + $0x240] sm:$0xff]
    %v162 = vld [vmem:[#allocation5 + $0x248] sm:$0xff]
    %v163 = vld [vmem:[#allocation5 + $0x250] sm:$0xff]
    %v164 = vld [vmem:[#allocation5 + $0x258] sm:$0xff]
    %v165 = vld [vmem:[#allocation5 + $0x260] sm:$0xff]
    %v166 = vld [vmem:[#allocation5 + $0x268] sm:$0xff]
    %v167 = vld [vmem:[#allocation5 + $0x270] sm:$0xff]
    %v168 = vld [vmem:[#allocation5 + $0x278] sm:$0xff]
    %v169 = vld [vmem:[#allocation5 + $0x280] sm:$0xff]
    %v170 = vld [vmem:[#allocation5 + $0x288] sm:$0xff]
    %v171 = vld [vmem:[#allocation5 + $0x290] sm:$0xff]
    %v172 = vld [vmem:[#allocation5 + $0x298] sm:$0xff]
    %v173 = vld [vmem:[#allocation5 + $0x2a0] sm:$0xff]
    %v174 = vld [vmem:[#allocation5 + $0x2a8] sm:$0xff]
    %v175 = vld [vmem:[#allocation5 + $0x2b0] sm:$0xff]
    %v176 = vld [vmem:[#allocation5 + $0x2b8] sm:$0xff]
    %v177 = vld [vmem:[#allocation5 + $0x2c0] sm:$0xff]
    %v178 = vld [vmem:[#allocation5 + $0x2c8] sm:$0xff]
    %v179 = vld [vmem:[#allocation5 + $0x2d0] sm:$0xff]
    %v180 = vld [vmem:[#allocation5 + $0x2d8] sm:$0xff]
    %v181 = vld [vmem:[#allocation5 + $0x2e0] sm:$0xff]
    %v182 = vld [vmem:[#allocation5 + $0x2e8] sm:$0xff]
    %v183 = vld [vmem:[#allocation5 + $0x2f0] sm:$0xff]
    %v184 = vld [vmem:[#allocation5 + $0x2f8] sm:$0xff]
    %v185 = vld [vmem:[#allocation5 + $0x300] sm:$0xff]
    %v186 = vld [vmem:[#allocation5 + $0x308] sm:$0xff]
    %v187 = vld [vmem:[#allocation5 + $0x310] sm:$0xff]
    %v188 = vld [vmem:[#allocation5 + $0x318] sm:$0xff]
    %v189 = vld [vmem:[#allocation5 + $0x320] sm:$0xff]
    %v190 = vld [vmem:[#allocation5 + $0x328] sm:$0xff]
    %v191 = vld [vmem:[#allocation5 + $0x330] sm:$0xff]
    %v192 = vld [vmem:[#allocation5 + $0x338] sm:$0xff]
    %v193 = vld [vmem:[#allocation5 + $0x340] sm:$0xff]
    %v194 = vld [vmem:[#allocation5 + $0x348] sm:$0xff]
    %v195 = vld [vmem:[#allocation5 + $0x350] sm:$0xff]
    %v196 = vld [vmem:[#allocation5 + $0x358] sm:$0xff]
    %v197 = vld [vmem:[#allocation5 + $0x360] sm:$0xff]
    %v198 = vld [vmem:[#allocation5 + $0x368] sm:$0xff]
    %v199 = vld [vmem:[#allocation5 + $0x370] sm:$0xff]
    %v200 = vld [vmem:[#allocation5 + $0x378] sm:$0xff]
    %v201 = vld [vmem:[#allocation5 + $0x380] sm:$0xff]
    %v202 = vld [vmem:[#allocation5 + $0x388] sm:$0xff]
    %v203 = vld [vmem:[#allocation5 + $0x390] sm:$0xff]
    %v204 = vld [vmem:[#allocation5 + $0x398] sm:$0xff]
    %v205 = vld [vmem:[#allocation5 + $0x3a0] sm:$0xff]
    %v206 = vld [vmem:[#allocation5 + $0x3a8] sm:$0xff]
    %v207 = vld [vmem:[#allocation5 + $0x3b0] sm:$0xff]
    %v208 = vld [vmem:[#allocation5 + $0x3b8] sm:$0xff]
    %v209 = vld [vmem:[#allocation5 + $0x3c0] sm:$0xff]
    %v210 = vld [vmem:[#allocation5 + $0x3c8] sm:$0xff]
    %v211 = vld [vmem:[#allocation5 + $0x3d0] sm:$0xff]
    %v212 = vld [vmem:[#allocation5 + $0x3d8] sm:$0xff]
    %v213 = vld [vmem:[#allocation5 + $0x3e0] sm:$0xff]
    %v214 = vld [vmem:[#allocation5 + $0x3e8] sm:$0xff]
    %v215 = vld [vmem:[#allocation5 + $0x3f0] sm:$0xff]
    %v216 = vld [vmem:[#allocation5 + $0x3f8] sm:$0xff]
    %v217 = vld [vmem:[#allocation5 + $0x400] sm:$0xff]
    %v218 = vld [vmem:[#allocation5 + $0x408] sm:$0xff]
    %v219 = vld [vmem:[#allocation5 + $0x410] sm:$0xff]
    %v220 = vld [vmem:[#allocation5 + $0x418] sm:$0xff]
    %v221 = vld [vmem:[#allocation5 + $0x420] sm:$0xff]
    %v222 = vld [vmem:[#allocation5 + $0x428] sm:$0xff]
    %v223 = vld [vmem:[#allocation5 + $0x430] sm:$0xff]
    %v224 = vld [vmem:[#allocation5 + $0x438] sm:$0xff]
    %v225 = vld [vmem:[#allocation5 + $0x440] sm:$0xff]
    %v226 = vld [vmem:[#allocation5 + $0x448] sm:$0xff]
    %v227 = vld [vmem:[#allocation5 + $0x450] sm:$0xff]
    %v228 = vld [vmem:[#allocation5 + $0x458] sm:$0xff]
    %v229 = vld [vmem:[#allocation5 + $0x460] sm:$0xff]
    %v230 = vld [vmem:[#allocation5 + $0x468] sm:$0xff]
    %v231 = vld [vmem:[#allocation5 + $0x470] sm:$0xff]
    %v232 = vld [vmem:[#allocation5 + $0x478] sm:$0xff]
    %v233 = vld [vmem:[#allocation5 + $0x480] sm:$0xff]
    %v234 = vld [vmem:[#allocation5 + $0x488] sm:$0xff]
    %v235 = vld [vmem:[#allocation5 + $0x490] sm:$0xff]
    %v236 = vld [vmem:[#allocation5 + $0x498] sm:$0xff]
    %v237 = vld [vmem:[#allocation5 + $0x4a0] sm:$0xff]
    %v238 = vld [vmem:[#allocation5 + $0x4a8] sm:$0xff]
    %v239 = vld [vmem:[#allocation5 + $0x4b0] sm:$0xff]
    %v240 = vld [vmem:[#allocation5 + $0x4b8] sm:$0xff]
    %v241 = vld [vmem:[#allocation5 + $0x4c0] sm:$0xff]
    %v242 = vld [vmem:[#allocation5 + $0x4c8] sm:$0xff]
    %v243 = vld [vmem:[#allocation5 + $0x4d0] sm:$0xff]
    %v244 = vld [vmem:[#allocation5 + $0x4d8] sm:$0xff]
    %v245 = vld [vmem:[#allocation5 + $0x4e0] sm:$0xff]
    %v246 = vld [vmem:[#allocation5 + $0x4e8] sm:$0xff]
    %v247 = vld [vmem:[#allocation5 + $0x4f0] sm:$0xff]
    %v248 = vld [vmem:[#allocation5 + $0x4f8] sm:$0xff]
    %v249 = vld [vmem:[#allocation5 + $0x500] sm:$0xff]
    %v250 = vld [vmem:[#allocation5 + $0x508] sm:$0xff]
    %v251 = vld [vmem:[#allocation5 + $0x510] sm:$0xff]
    %v252 = vld [vmem:[#allocation5 + $0x518] sm:$0xff]
    %v253 = vld [vmem:[#allocation5 + $0x520] sm:$0xff]
    %v254 = vld [vmem:[#allocation5 + $0x528] sm:$0xff]
    %v255 = vld [vmem:[#allocation5 + $0x530] sm:$0xff]
    %v256 = vld [vmem:[#allocation5 + $0x538] sm:$0xff]
    %v257 = vld [vmem:[#allocation5 + $0x540] sm:$0xff]
    %v258 = vld [vmem:[#allocation5 + $0x548] sm:$0xff]
    %v259 = vld [vmem:[#allocation5 + $0x550] sm:$0xff]
    %v260 = vld [vmem:[#allocation5 + $0x558] sm:$0xff]
    %v261 = vld [vmem:[#allocation5 + $0x560] sm:$0xff]
    %v262 = vld [vmem:[#allocation5 + $0x568] sm:$0xff]
    %v263 = vld [vmem:[#allocation5 + $0x570] sm:$0xff]
    %v264 = vld [vmem:[#allocation5 + $0x578] sm:$0xff]
    %v265 = vld [vmem:[#allocation5 + $0x580] sm:$0xff]
    %v266 = vld [vmem:[#allocation5 + $0x588] sm:$0xff]
    %v267 = vld [vmem:[#allocation5 + $0x590] sm:$0xff]
    %v268 = vld [vmem:[#allocation5 + $0x598] sm:$0xff]
    %v269 = vld [vmem:[#allocation5 + $0x5a0] sm:$0xff]
    %v270 = vld [vmem:[#allocation5 + $0x5a8] sm:$0xff]
    %v271 = vld [vmem:[#allocation5 + $0x5b0] sm:$0xff]
    %v272 = vld [vmem:[#allocation5 + $0x5b8] sm:$0xff]
    %v273 = vld [vmem:[#allocation5 + $0x5c0] sm:$0xff]
    %v274 = vld [vmem:[#allocation5 + $0x5c8] sm:$0xff]
    %v275 = vld [vmem:[#allocation5 + $0x5d0] sm:$0xff]
    %v276 = vld [vmem:[#allocation5 + $0x5d8] sm:$0xff]
    %v277 = vld [vmem:[#allocation5 + $0x5e0] sm:$0xff]
    %v278 = vld [vmem:[#allocation5 + $0x5e8] sm:$0xff]
    %v279 = vld [vmem:[#allocation5 + $0x5f0] sm:$0xff]
    %v280 = vld [vmem:[#allocation5 + $0x5f8] sm:$0xff]
    %v281 = vld [vmem:[#allocation5 + $0x600] sm:$0xff]
    %v282 = vld [vmem:[#allocation5 + $0x608] sm:$0xff]
    %v283 = vld [vmem:[#allocation5 + $0x610] sm:$0xff]
    %v284 = vld [vmem:[#allocation5 + $0x618] sm:$0xff]
    %v285 = vld [vmem:[#allocation5 + $0x620] sm:$0xff]
    %v286 = vld [vmem:[#allocation5 + $0x628] sm:$0xff]
    %v287 = vld [vmem:[#allocation5 + $0x630] sm:$0xff]
    %v288 = vld [vmem:[#allocation5 + $0x638] sm:$0xff]
    %v289 = vld [vmem:[#allocation5 + $0x640] sm:$0xff]
    %v290 = vld [vmem:[#allocation5 + $0x648] sm:$0xff]
    %v291 = vld [vmem:[#allocation5 + $0x650] sm:$0xff]
    %v292 = vld [vmem:[#allocation5 + $0x658] sm:$0xff]
    %v293 = vld [vmem:[#allocation5 + $0x660] sm:$0xff]
    %v294 = vld [vmem:[#allocation5 + $0x668] sm:$0xff]
    %v295 = vld [vmem:[#allocation5 + $0x670] sm:$0xff]
    %v296 = vld [vmem:[#allocation5 + $0x678] sm:$0xff]
    %v297 = vld [vmem:[#allocation5 + $0x680] sm:$0xff]
    %v298 = vld [vmem:[#allocation5 + $0x688] sm:$0xff]
    %v299 = vld [vmem:[#allocation5 + $0x690] sm:$0xff]
    %v300 = vld [vmem:[#allocation5 + $0x698] sm:$0xff]
    %v301 = vld [vmem:[#allocation5 + $0x6a0] sm:$0xff]
    %v302 = vld [vmem:[#allocation5 + $0x6a8] sm:$0xff]
    %v303 = vld [vmem:[#allocation5 + $0x6b0] sm:$0xff]
    %v304 = vld [vmem:[#allocation5 + $0x6b8] sm:$0xff]
    %v305 = vld [vmem:[#allocation5 + $0x6c0] sm:$0xff]
    %v306 = vld [vmem:[#allocation5 + $0x6c8] sm:$0xff]
    %v307 = vld [vmem:[#allocation5 + $0x6d0] sm:$0xff]
    %v308 = vld [vmem:[#allocation5 + $0x6d8] sm:$0xff]
    %v309 = vld [vmem:[#allocation5 + $0x6e0] sm:$0xff]
    %v310 = vld [vmem:[#allocation5 + $0x6e8] sm:$0xff]
    %v311 = vld [vmem:[#allocation5 + $0x6f0] sm:$0xff]
    %v312 = vld [vmem:[#allocation5 + $0x6f8] sm:$0xff]
    %v313 = vld [vmem:[#allocation5 + $0x700] sm:$0xff]
    %v314 = vld [vmem:[#allocation5 + $0x708] sm:$0xff]
    %v315 = vld [vmem:[#allocation5 + $0x710] sm:$0xff]
    %v316 = vld [vmem:[#allocation5 + $0x718] sm:$0xff]
    %v317 = vld [vmem:[#allocation5 + $0x720] sm:$0xff]
    %v318 = vld [vmem:[#allocation5 + $0x728] sm:$0xff]
    %v319 = vld [vmem:[#allocation5 + $0x730] sm:$0xff]
    %v320 = vld [vmem:[#allocation5 + $0x738] sm:$0xff]
    %v321 = vld [vmem:[#allocation5 + $0x740] sm:$0xff]
    %v322 = vld [vmem:[#allocation5 + $0x748] sm:$0xff]
    %v323 = vld [vmem:[#allocation5 + $0x750] sm:$0xff]
    %v324 = vld [vmem:[#allocation5 + $0x758] sm:$0xff]
    %v325 = vld [vmem:[#allocation5 + $0x760] sm:$0xff]
    %v326 = vld [vmem:[#allocation5 + $0x768] sm:$0xff]
    %v327 = vld [vmem:[#allocation5 + $0x770] sm:$0xff]
    %v328 = vld [vmem:[#allocation5 + $0x778] sm:$0xff]
    %v329 = vld [vmem:[#allocation5 + $0x780] sm:$0xff]
    %v330 = vld [vmem:[#allocation5 + $0x788] sm:$0xff]
    %v331 = vld [vmem:[#allocation5 + $0x790] sm:$0xff]
    %v332 = vld [vmem:[#allocation5 + $0x798] sm:$0xff]
    %v333 = vld [vmem:[#allocation5 + $0x7a0] sm:$0xff]
    %v334 = vld [vmem:[#allocation5 + $0x7a8] sm:$0xff]
    %v335 = vld [vmem:[#allocation5 + $0x7b0] sm:$0xff]
    %v336 = vld [vmem:[#allocation5 + $0x7b8] sm:$0xff]
    %v337 = vld [vmem:[#allocation5 + $0x7c0] sm:$0xff]
    %v338 = vld [vmem:[#allocation5 + $0x7c8] sm:$0xff]
    %v339 = vld [vmem:[#allocation7] sm:$0xf]
    %v341 = vlaneseq
    %v342 = vshrl.u32 %v341, 7
    %v343 = vsub.s32 0, %v342
    %v344 = vrot.slane %v339, %v343
    %v345 = vlaneseq
    %v346 = vshrl.u32 %v345, 7
    %v347 = vsub.s32 1, %v346
    %v348 = vrot.slane %v339, %v347
    %v349 = vlaneseq
    %v350 = vshrl.u32 %v349, 7
    %v351 = vsub.s32 2, %v350
    %v352 = vrot.slane %v339, %v351
    %v353 = vlaneseq
    %v354 = vshrl.u32 %v353, 7
    %v355 = vsub.s32 3, %v354
    %v356 = vrot.slane %v339, %v355
    %v611 = vunpack.c.l.b16 %v89
    %v612 = vunpack.c.h.b16 %v89
    %v613 = vunpack.c.l.b16 %v90
    %v614 = vunpack.c.h.b16 %v90
    %v615 = vunpack.c.l.b16 %v91
    %v616 = vunpack.c.h.b16 %v91
    %v617 = vunpack.c.l.b16 %v92
    %v618 = vunpack.c.h.b16 %v92
    %v619 = vunpack.c.l.b16 %v93
    %v620 = vunpack.c.h.b16 %v93
    %v621 = vunpack.c.l.b16 %v94
    %v622 = vunpack.c.h.b16 %v94
    %v623 = vunpack.c.l.b16 %v95
    %v624 = vunpack.c.h.b16 %v95
    %v625 = vunpack.c.l.b16 %v96
    %v626 = vunpack.c.h.b16 %v96
    %v627 = vunpack.c.l.b16 %v97
    %v628 = vunpack.c.h.b16 %v97
    %v629 = vunpack.c.l.b16 %v98
    %v630 = vunpack.c.h.b16 %v98
    %v631 = vunpack.c.l.b16 %v99
    %v632 = vunpack.c.h.b16 %v99
    %v633 = vunpack.c.l.b16 %v100
    %v634 = vunpack.c.h.b16 %v100
    %v635 = vunpack.c.l.b16 %v101
    %v636 = vunpack.c.h.b16 %v101
    %v637 = vunpack.c.l.b16 %v102
    %v638 = vunpack.c.h.b16 %v102
    %v639 = vunpack.c.l.b16 %v103
    %v640 = vunpack.c.h.b16 %v103
    %v641 = vunpack.c.l.b16 %v104
    %v642 = vunpack.c.h.b16 %v104
    %v643 = vunpack.c.l.b16 %v105
    %v644 = vunpack.c.h.b16 %v105
    %v645 = vunpack.c.l.b16 %v106
    %v646 = vunpack.c.h.b16 %v106
    %v647 = vunpack.c.l.b16 %v107
    %v648 = vunpack.c.h.b16 %v107
    %v649 = vunpack.c.l.b16 %v108
    %v650 = vunpack.c.h.b16 %v108
    %v651 = vunpack.c.l.b16 %v109
    %v652 = vunpack.c.h.b16 %v109
    %v653 = vunpack.c.l.b16 %v110
    %v654 = vunpack.c.h.b16 %v110
    %v655 = vunpack.c.l.b16 %v111
    %v656 = vunpack.c.h.b16 %v111
    %v657 = vunpack.c.l.b16 %v112
    %v658 = vunpack.c.h.b16 %v112
    %v659 = vunpack.c.l.b16 %v113
    %v660 = vunpack.c.h.b16 %v113
    %v661 = vunpack.c.l.b16 %v114
    %v662 = vunpack.c.h.b16 %v114
    %v663 = vunpack.c.l.b16 %v115
    %v664 = vunpack.c.h.b16 %v115
    %v665 = vunpack.c.l.b16 %v116
    %v666 = vunpack.c.h.b16 %v116
    %v667 = vunpack.c.l.b16 %v117
    %v668 = vunpack.c.h.b16 %v117
    %v669 = vunpack.c.l.b16 %v118
    %v670 = vunpack.c.h.b16 %v118
    %v671 = vunpack.c.l.b16 %v119
    %v672 = vunpack.c.h.b16 %v119
    %v673 = vunpack.c.l.b16 %v120
    %v674 = vunpack.c.h.b16 %v120
    %v675 = vunpack.c.l.b16 %v121
    %v676 = vunpack.c.h.b16 %v121
    %v677 = vunpack.c.l.b16 %v122
    %v678 = vunpack.c.h.b16 %v122
    %v679 = vunpack.c.l.b16 %v123
    %v680 = vunpack.c.h.b16 %v123
    %v681 = vunpack.c.l.b16 %v124
    %v682 = vunpack.c.h.b16 %v124
    %v683 = vunpack.c.l.b16 %v125
    %v684 = vunpack.c.h.b16 %v125
    %v685 = vunpack.c.l.b16 %v126
    %v686 = vunpack.c.h.b16 %v126
    %v687 = vunpack.c.l.b16 %v127
    %v688 = vunpack.c.h.b16 %v127
    %v689 = vunpack.c.l.b16 %v128
    %v690 = vunpack.c.h.b16 %v128
    %v691 = vunpack.c.l.b16 %v129
    %v692 = vunpack.c.h.b16 %v129
    %v693 = vunpack.c.l.b16 %v130
    %v694 = vunpack.c.h.b16 %v130
    %v695 = vunpack.c.l.b16 %v131
    %v696 = vunpack.c.h.b16 %v131
    %v697 = vunpack.c.l.b16 %v132
    %v698 = vunpack.c.h.b16 %v132
    %v699 = vunpack.c.l.b16 %v133
    %v700 = vunpack.c.h.b16 %v133
    %v701 = vunpack.c.l.b16 %v134
    %v702 = vunpack.c.h.b16 %v134
    %v703 = vunpack.c.l.b16 %v135
    %v704 = vunpack.c.h.b16 %v135
    %v705 = vunpack.c.l.b16 %v136
    %v706 = vunpack.c.h.b16 %v136
    %v707 = vunpack.c.l.b16 %v137
    %v708 = vunpack.c.h.b16 %v137
    %v709 = vunpack.c.l.b16 %v138
    %v710 = vunpack.c.h.b16 %v138
    %v711 = vunpack.c.l.b16 %v139
    %v712 = vunpack.c.h.b16 %v139
    %v713 = vunpack.c.l.b16 %v140
    %v714 = vunpack.c.h.b16 %v140
    %v715 = vunpack.c.l.b16 %v141
    %v716 = vunpack.c.h.b16 %v141
    %v717 = vunpack.c.l.b16 %v142
    %v718 = vunpack.c.h.b16 %v142
    %v719 = vunpack.c.l.b16 %v143
    %v720 = vunpack.c.h.b16 %v143
    %v721 = vunpack.c.l.b16 %v144
    %v722 = vunpack.c.h.b16 %v144
    %v723 = vunpack.c.l.b16 %v145
    %v724 = vunpack.c.h.b16 %v145
    %v725 = vunpack.c.l.b16 %v146
    %v726 = vunpack.c.h.b16 %v146
    %v727 = vunpack.c.l.b16 %v147
    %v728 = vunpack.c.h.b16 %v147
    %v729 = vunpack.c.l.b16 %v148
    %v730 = vunpack.c.h.b16 %v148
    %v731 = vunpack.c.l.b16 %v149
    %v732 = vunpack.c.h.b16 %v149
    %v733 = vunpack.c.l.b16 %v150
    %v734 = vunpack.c.h.b16 %v150
    %v735 = vunpack.c.l.b16 %v151
    %v736 = vunpack.c.h.b16 %v151
    %v737 = vunpack.c.l.b16 %v152
    %v738 = vunpack.c.h.b16 %v152
    %v739 = vunpack.c.l.b16 %v153
    %v740 = vunpack.c.h.b16 %v153
    %v741 = vunpack.c.l.b16 %v154
    %v742 = vunpack.c.h.b16 %v154
    %v743 = vunpack.c.l.b16 %v155
    %v744 = vunpack.c.h.b16 %v155
    %v745 = vunpack.c.l.b16 %v156
    %v746 = vunpack.c.h.b16 %v156
    %v747 = vunpack.c.l.b16 %v157
    %v748 = vunpack.c.h.b16 %v157
    %v749 = vunpack.c.l.b16 %v158
    %v750 = vunpack.c.h.b16 %v158
    %v751 = vunpack.c.l.b16 %v159
    %v752 = vunpack.c.h.b16 %v159
    %v753 = vunpack.c.l.b16 %v160
    %v754 = vunpack.c.h.b16 %v160
    %v755 = vunpack.c.l.b16 %v161
    %v756 = vunpack.c.h.b16 %v161
    %v757 = vunpack.c.l.b16 %v162
    %v758 = vunpack.c.h.b16 %v162
    %v759 = vunpack.c.l.b16 %v163
    %v760 = vunpack.c.h.b16 %v163
    %v761 = vunpack.c.l.b16 %v164
    %v762 = vunpack.c.h.b16 %v164
    %v763 = vunpack.c.l.b16 %v165
    %v764 = vunpack.c.h.b16 %v165
    %v765 = vunpack.c.l.b16 %v166
    %v766 = vunpack.c.h.b16 %v166
    %v767 = vunpack.c.l.b16 %v167
    %v768 = vunpack.c.h.b16 %v167
    %v769 = vunpack.c.l.b16 %v168
    %v770 = vunpack.c.h.b16 %v168
    %v771 = vunpack.c.l.b16 %v169
    %v772 = vunpack.c.h.b16 %v169
    %v773 = vunpack.c.l.b16 %v170
    %v774 = vunpack.c.h.b16 %v170
    %v775 = vunpack.c.l.b16 %v171
    %v776 = vunpack.c.h.b16 %v171
    %v777 = vunpack.c.l.b16 %v172
    %v778 = vunpack.c.h.b16 %v172
    %v779 = vunpack.c.l.b16 %v173
    %v780 = vunpack.c.h.b16 %v173
    %v781 = vunpack.c.l.b16 %v174
    %v782 = vunpack.c.h.b16 %v174
    %v783 = vunpack.c.l.b16 %v175
    %v784 = vunpack.c.h.b16 %v175
    %v785 = vunpack.c.l.b16 %v176
    %v786 = vunpack.c.h.b16 %v176
    %v787 = vunpack.c.l.b16 %v177
    %v788 = vunpack.c.h.b16 %v177
    %v789 = vunpack.c.l.b16 %v178
    %v790 = vunpack.c.h.b16 %v178
    %v791 = vunpack.c.l.b16 %v179
    %v792 = vunpack.c.h.b16 %v179
    %v793 = vunpack.c.l.b16 %v180
    %v794 = vunpack.c.h.b16 %v180
    %v795 = vunpack.c.l.b16 %v181
    %v796 = vunpack.c.h.b16 %v181
    %v797 = vunpack.c.l.b16 %v182
    %v798 = vunpack.c.h.b16 %v182
    %v799 = vunpack.c.l.b16 %v183
    %v800 = vunpack.c.h.b16 %v183
    %v801 = vunpack.c.l.b16 %v184
    %v802 = vunpack.c.h.b16 %v184
    %v803 = vunpack.c.l.b16 %v185
    %v804 = vunpack.c.h.b16 %v185
    %v805 = vunpack.c.l.b16 %v186
    %v806 = vunpack.c.h.b16 %v186
    %v807 = vunpack.c.l.b16 %v187
    %v808 = vunpack.c.h.b16 %v187
    %v809 = vunpack.c.l.b16 %v188
    %v810 = vunpack.c.h.b16 %v188
    %v811 = vunpack.c.l.b16 %v189
    %v812 = vunpack.c.h.b16 %v189
    %v813 = vunpack.c.l.b16 %v190
    %v814 = vunpack.c.h.b16 %v190
    %v815 = vunpack.c.l.b16 %v191
    %v816 = vunpack.c.h.b16 %v191
    %v817 = vunpack.c.l.b16 %v192
    %v818 = vunpack.c.h.b16 %v192
    %v819 = vunpack.c.l.b16 %v193
    %v820 = vunpack.c.h.b16 %v193
    %v821 = vunpack.c.l.b16 %v194
    %v822 = vunpack.c.h.b16 %v194
    %v823 = vunpack.c.l.b16 %v195
    %v824 = vunpack.c.h.b16 %v195
    %v825 = vunpack.c.l.b16 %v196
    %v826 = vunpack.c.h.b16 %v196
    %v827 = vunpack.c.l.b16 %v197
    %v828 = vunpack.c.h.b16 %v197
    %v829 = vunpack.c.l.b16 %v198
    %v830 = vunpack.c.h.b16 %v198
    %v831 = vunpack.c.l.b16 %v199
    %v832 = vunpack.c.h.b16 %v199
    %v833 = vunpack.c.l.b16 %v200
    %v834 = vunpack.c.h.b16 %v200
    %v835 = vunpack.c.l.b16 %v201
    %v836 = vunpack.c.h.b16 %v201
    %v837 = vunpack.c.l.b16 %v202
    %v838 = vunpack.c.h.b16 %v202
    %v839 = vunpack.c.l.b16 %v203
    %v840 = vunpack.c.h.b16 %v203
    %v841 = vunpack.c.l.b16 %v204
    %v842 = vunpack.c.h.b16 %v204
    %v843 = vunpack.c.l.b16 %v205
    %v844 = vunpack.c.h.b16 %v205
    %v845 = vunpack.c.l.b16 %v206
    %v846 = vunpack.c.h.b16 %v206
    %v847 = vunpack.c.l.b16 %v207
    %v848 = vunpack.c.h.b16 %v207
    %v849 = vunpack.c.l.b16 %v208
    %v850 = vunpack.c.h.b16 %v208
    %v851 = vunpack.c.l.b16 %v209
    %v852 = vunpack.c.h.b16 %v209
    %v853 = vunpack.c.l.b16 %v210
    %v854 = vunpack.c.h.b16 %v210
    %v855 = vunpack.c.l.b16 %v211
    %v856 = vunpack.c.h.b16 %v211
    %v857 = vunpack.c.l.b16 %v212
    %v858 = vunpack.c.h.b16 %v212
    %v859 = vunpack.c.l.b16 %v213
    %v860 = vunpack.c.h.b16 %v213
    %v861 = vunpack.c.l.b16 %v214
    %v862 = vunpack.c.h.b16 %v214
    %v863 = vunpack.c.l.b16 %v215
    %v864 = vunpack.c.h.b16 %v215
    %v865 = vunpack.c.l.b16 %v216
    %v866 = vunpack.c.h.b16 %v216
    %v867 = vunpack.c.l.b16 %v217
    %v868 = vunpack.c.h.b16 %v217
    %v869 = vunpack.c.l.b16 %v218
    %v870 = vunpack.c.h.b16 %v218
    %v871 = vunpack.c.l.b16 %v219
    %v872 = vunpack.c.h.b16 %v219
    %v873 = vunpack.c.l.b16 %v220
    %v874 = vunpack.c.h.b16 %v220
    %v875 = vunpack.c.l.b16 %v221
    %v876 = vunpack.c.h.b16 %v221
    %v877 = vunpack.c.l.b16 %v222
    %v878 = vunpack.c.h.b16 %v222
    %v879 = vunpack.c.l.b16 %v223
    %v880 = vunpack.c.h.b16 %v223
    %v881 = vunpack.c.l.b16 %v224
    %v882 = vunpack.c.h.b16 %v224
    %v883 = vunpack.c.l.b16 %v225
    %v884 = vunpack.c.h.b16 %v225
    %v885 = vunpack.c.l.b16 %v226
    %v886 = vunpack.c.h.b16 %v226
    %v887 = vunpack.c.l.b16 %v227
    %v888 = vunpack.c.h.b16 %v227
    %v889 = vunpack.c.l.b16 %v228
    %v890 = vunpack.c.h.b16 %v228
    %v891 = vunpack.c.l.b16 %v229
    %v892 = vunpack.c.h.b16 %v229
    %v893 = vunpack.c.l.b16 %v230
    %v894 = vunpack.c.h.b16 %v230
    %v895 = vunpack.c.l.b16 %v231
    %v896 = vunpack.c.h.b16 %v231
    %v897 = vunpack.c.l.b16 %v232
    %v898 = vunpack.c.h.b16 %v232
    %v899 = vunpack.c.l.b16 %v233
    %v900 = vunpack.c.h.b16 %v233
    %v901 = vunpack.c.l.b16 %v234
    %v902 = vunpack.c.h.b16 %v234
    %v903 = vunpack.c.l.b16 %v235
    %v904 = vunpack.c.h.b16 %v235
    %v905 = vunpack.c.l.b16 %v236
    %v906 = vunpack.c.h.b16 %v236
    %v907 = vunpack.c.l.b16 %v237
    %v908 = vunpack.c.h.b16 %v237
    %v909 = vunpack.c.l.b16 %v238
    %v910 = vunpack.c.h.b16 %v238
    %v911 = vunpack.c.l.b16 %v239
    %v912 = vunpack.c.h.b16 %v239
    %v913 = vunpack.c.l.b16 %v240
    %v914 = vunpack.c.h.b16 %v240
    %v915 = vunpack.c.l.b16 %v241
    %v916 = vunpack.c.h.b16 %v241
    %v917 = vunpack.c.l.b16 %v242
    %v918 = vunpack.c.h.b16 %v242
    %v919 = vunpack.c.l.b16 %v243
    %v920 = vunpack.c.h.b16 %v243
    %v921 = vunpack.c.l.b16 %v244
    %v922 = vunpack.c.h.b16 %v244
    %v923 = vunpack.c.l.b16 %v245
    %v924 = vunpack.c.h.b16 %v245
    %v925 = vunpack.c.l.b16 %v246
    %v926 = vunpack.c.h.b16 %v246
    %v927 = vunpack.c.l.b16 %v247
    %v928 = vunpack.c.h.b16 %v247
    %v929 = vunpack.c.l.b16 %v248
    %v930 = vunpack.c.h.b16 %v248
    %v931 = vunpack.c.l.b16 %v249
    %v932 = vunpack.c.h.b16 %v249
    %v933 = vunpack.c.l.b16 %v250
    %v934 = vunpack.c.h.b16 %v250
    %v935 = vunpack.c.l.b16 %v251
    %v936 = vunpack.c.h.b16 %v251
    %v937 = vunpack.c.l.b16 %v252
    %v938 = vunpack.c.h.b16 %v252
    %v939 = vunpack.c.l.b16 %v253
    %v940 = vunpack.c.h.b16 %v253
    %v941 = vunpack.c.l.b16 %v254
    %v942 = vunpack.c.h.b16 %v254
    %v943 = vunpack.c.l.b16 %v255
    %v944 = vunpack.c.h.b16 %v255
    %v945 = vunpack.c.l.b16 %v256
    %v946 = vunpack.c.h.b16 %v256
    %v947 = vunpack.c.l.b16 %v257
    %v948 = vunpack.c.h.b16 %v257
    %v949 = vunpack.c.l.b16 %v258
    %v950 = vunpack.c.h.b16 %v258
    %v951 = vunpack.c.l.b16 %v259
    %v952 = vunpack.c.h.b16 %v259
    %v953 = vunpack.c.l.b16 %v260
    %v954 = vunpack.c.h.b16 %v260
    %v955 = vunpack.c.l.b16 %v261
    %v956 = vunpack.c.h.b16 %v261
    %v957 = vunpack.c.l.b16 %v262
    %v958 = vunpack.c.h.b16 %v262
    %v959 = vunpack.c.l.b16 %v263
    %v960 = vunpack.c.h.b16 %v263
    %v961 = vunpack.c.l.b16 %v264
    %v962 = vunpack.c.h.b16 %v264
    %v963 = vunpack.c.l.b16 %v265
    %v964 = vunpack.c.h.b16 %v265
    %v965 = vunpack.c.l.b16 %v266
    %v966 = vunpack.c.h.b16 %v266
    %v967 = vunpack.c.l.b16 %v267
    %v968 = vunpack.c.h.b16 %v267
    %v969 = vunpack.c.l.b16 %v268
    %v970 = vunpack.c.h.b16 %v268
    %v971 = vunpack.c.l.b16 %v269
    %v972 = vunpack.c.h.b16 %v269
    %v973 = vunpack.c.l.b16 %v270
    %v974 = vunpack.c.h.b16 %v270
    %v975 = vunpack.c.l.b16 %v271
    %v976 = vunpack.c.h.b16 %v271
    %v977 = vunpack.c.l.b16 %v272
    %v978 = vunpack.c.h.b16 %v272
    %v979 = vunpack.c.l.b16 %v273
    %v980 = vunpack.c.h.b16 %v273
    %v981 = vunpack.c.l.b16 %v274
    %v982 = vunpack.c.h.b16 %v274
    %v983 = vunpack.c.l.b16 %v275
    %v984 = vunpack.c.h.b16 %v275
    %v985 = vunpack.c.l.b16 %v276
    %v986 = vunpack.c.h.b16 %v276
    %v987 = vunpack.c.l.b16 %v277
    %v988 = vunpack.c.h.b16 %v277
    %v989 = vunpack.c.l.b16 %v278
    %v990 = vunpack.c.h.b16 %v278
    %v991 = vunpack.c.l.b16 %v279
    %v992 = vunpack.c.h.b16 %v279
    %v993 = vunpack.c.l.b16 %v280
    %v994 = vunpack.c.h.b16 %v280
    %v995 = vunpack.c.l.b16 %v281
    %v996 = vunpack.c.h.b16 %v281
    %v997 = vunpack.c.l.b16 %v282
    %v998 = vunpack.c.h.b16 %v282
    %v999 = vunpack.c.l.b16 %v283
    %v1000 = vunpack.c.h.b16 %v283
    %v1001 = vunpack.c.l.b16 %v284
    %v1002 = vunpack.c.h.b16 %v284
    %v1003 = vunpack.c.l.b16 %v285
    %v1004 = vunpack.c.h.b16 %v285
    %v1005 = vunpack.c.l.b16 %v286
    %v1006 = vunpack.c.h.b16 %v286
    %v1007 = vunpack.c.l.b16 %v287
    %v1008 = vunpack.c.h.b16 %v287
    %v1009 = vunpack.c.l.b16 %v288
    %v1010 = vunpack.c.h.b16 %v288
    %v1011 = vunpack.c.l.b16 %v289
    %v1012 = vunpack.c.h.b16 %v289
    %v1013 = vunpack.c.l.b16 %v290
    %v1014 = vunpack.c.h.b16 %v290
    %v1015 = vunpack.c.l.b16 %v291
    %v1016 = vunpack.c.h.b16 %v291
    %v1017 = vunpack.c.l.b16 %v292
    %v1018 = vunpack.c.h.b16 %v292
    %v1019 = vunpack.c.l.b16 %v293
    %v1020 = vunpack.c.h.b16 %v293
    %v1021 = vunpack.c.l.b16 %v294
    %v1022 = vunpack.c.h.b16 %v294
    %v1023 = vunpack.c.l.b16 %v295
    %v1024 = vunpack.c.h.b16 %v295
    %v1025 = vunpack.c.l.b16 %v296
    %v1026 = vunpack.c.h.b16 %v296
    %v1027 = vunpack.c.l.b16 %v297
    %v1028 = vunpack.c.h.b16 %v297
    %v1029 = vunpack.c.l.b16 %v298
    %v1030 = vunpack.c.h.b16 %v298
    %v1031 = vunpack.c.l.b16 %v299
    %v1032 = vunpack.c.h.b16 %v299
    %v1033 = vunpack.c.l.b16 %v300
    %v1034 = vunpack.c.h.b16 %v300
    %v1035 = vunpack.c.l.b16 %v301
    %v1036 = vunpack.c.h.b16 %v301
    %v1037 = vunpack.c.l.b16 %v302
    %v1038 = vunpack.c.h.b16 %v302
    %v1039 = vunpack.c.l.b16 %v303
    %v1040 = vunpack.c.h.b16 %v303
    %v1041 = vunpack.c.l.b16 %v304
    %v1042 = vunpack.c.h.b16 %v304
    %v1043 = vunpack.c.l.b16 %v305
    %v1044 = vunpack.c.h.b16 %v305
    %v1045 = vunpack.c.l.b16 %v306
    %v1046 = vunpack.c.h.b16 %v306
    %v1047 = vunpack.c.l.b16 %v307
    %v1048 = vunpack.c.h.b16 %v307
    %v1049 = vunpack.c.l.b16 %v308
    %v1050 = vunpack.c.h.b16 %v308
    %v1051 = vunpack.c.l.b16 %v309
    %v1052 = vunpack.c.h.b16 %v309
    %v1053 = vunpack.c.l.b16 %v310
    %v1054 = vunpack.c.h.b16 %v310
    %v1055 = vunpack.c.l.b16 %v311
    %v1056 = vunpack.c.h.b16 %v311
    %v1057 = vunpack.c.l.b16 %v312
    %v1058 = vunpack.c.h.b16 %v312
    %v1059 = vunpack.c.l.b16 %v313
    %v1060 = vunpack.c.h.b16 %v313
    %v1061 = vunpack.c.l.b16 %v314
    %v1062 = vunpack.c.h.b16 %v314
    %v1063 = vunpack.c.l.b16 %v315
    %v1064 = vunpack.c.h.b16 %v315
    %v1065 = vunpack.c.l.b16 %v316
    %v1066 = vunpack.c.h.b16 %v316
    %v1067 = vunpack.c.l.b16 %v317
    %v1068 = vunpack.c.h.b16 %v317
    %v1069 = vunpack.c.l.b16 %v318
    %v1070 = vunpack.c.h.b16 %v318
    %v1071 = vunpack.c.l.b16 %v319
    %v1072 = vunpack.c.h.b16 %v319
    %v1073 = vunpack.c.l.b16 %v320
    %v1074 = vunpack.c.h.b16 %v320
    %v1075 = vunpack.c.l.b16 %v321
    %v1076 = vunpack.c.h.b16 %v321
    %v1077 = vunpack.c.l.b16 %v322
    %v1078 = vunpack.c.h.b16 %v322
    %v1079 = vunpack.c.l.b16 %v323
    %v1080 = vunpack.c.h.b16 %v323
    %v1081 = vunpack.c.l.b16 %v324
    %v1082 = vunpack.c.h.b16 %v324
    %v1083 = vunpack.c.l.b16 %v325
    %v1084 = vunpack.c.h.b16 %v325
    %v1085 = vunpack.c.l.b16 %v326
    %v1086 = vunpack.c.h.b16 %v326
    %v1087 = vunpack.c.l.b16 %v327
    %v1088 = vunpack.c.h.b16 %v327
    %v1089 = vunpack.c.l.b16 %v328
    %v1090 = vunpack.c.h.b16 %v328
    %v1091 = vunpack.c.l.b16 %v329
    %v1092 = vunpack.c.h.b16 %v329
    %v1093 = vunpack.c.l.b16 %v330
    %v1094 = vunpack.c.h.b16 %v330
    %v1095 = vunpack.c.l.b16 %v331
    %v1096 = vunpack.c.h.b16 %v331
    %v1097 = vunpack.c.l.b16 %v332
    %v1098 = vunpack.c.h.b16 %v332
    %v1099 = vunpack.c.l.b16 %v333
    %v1100 = vunpack.c.h.b16 %v333
    %v1101 = vunpack.c.l.b16 %v334
    %v1102 = vunpack.c.h.b16 %v334
    %v1103 = vunpack.c.l.b16 %v335
    %v1104 = vunpack.c.h.b16 %v335
    %v1105 = vunpack.c.l.b16 %v336
    %v1106 = vunpack.c.h.b16 %v336
    %v1107 = vunpack.c.l.b16 %v337
    %v1108 = vunpack.c.h.b16 %v337
    %v1109 = vunpack.c.l.b16 %v338
    %v1110 = vunpack.c.h.b16 %v338
    %v1111 = vpack.c.b16 %v615, %v611
    %v1112 = vpack.c.b16 %v616, %v612
    %v1113 = vpack.c.b16 %v617, %v613
    %v1114 = vpack.c.b16 %v618, %v614
    %v1115 = vpack.c.b16 %v623, %v619
    %v1116 = vpack.c.b16 %v624, %v620
    %v1117 = vpack.c.b16 %v625, %v621
    %v1118 = vpack.c.b16 %v626, %v622
    %v1119 = vpack.c.b16 %v631, %v627
    %v1120 = vpack.c.b16 %v632, %v628
    %v1121 = vpack.c.b16 %v633, %v629
    %v1122 = vpack.c.b16 %v634, %v630
    %v1123 = vpack.c.b16 %v639, %v635
    %v1124 = vpack.c.b16 %v640, %v636
    %v1125 = vpack.c.b16 %v641, %v637
    %v1126 = vpack.c.b16 %v642, %v638
    %v1127 = vpack.c.b16 %v647, %v643
    %v1128 = vpack.c.b16 %v648, %v644
    %v1129 = vpack.c.b16 %v649, %v645
    %v1130 = vpack.c.b16 %v650, %v646
    %v1131 = vpack.c.b16 %v655, %v651
    %v1132 = vpack.c.b16 %v656, %v652
    %v1133 = vpack.c.b16 %v657, %v653
    %v1134 = vpack.c.b16 %v658, %v654
    %v1135 = vpack.c.b16 %v663, %v659
    %v1136 = vpack.c.b16 %v664, %v660
    %v1137 = vpack.c.b16 %v665, %v661
    %v1138 = vpack.c.b16 %v666, %v662
    %v1139 = vpack.c.b16 %v671, %v667
    %v1140 = vpack.c.b16 %v672, %v668
    %v1141 = vpack.c.b16 %v673, %v669
    %v1142 = vpack.c.b16 %v674, %v670
    %v1143 = vpack.c.b16 %v679, %v675
    %v1144 = vpack.c.b16 %v680, %v676
    %v1145 = vpack.c.b16 %v681, %v677
    %v1146 = vpack.c.b16 %v682, %v678
    %v1147 = vpack.c.b16 %v687, %v683
    %v1148 = vpack.c.b16 %v688, %v684
    %v1149 = vpack.c.b16 %v689, %v685
    %v1150 = vpack.c.b16 %v690, %v686
    %v1151 = vpack.c.b16 %v695, %v691
    %v1152 = vpack.c.b16 %v696, %v692
    %v1153 = vpack.c.b16 %v697, %v693
    %v1154 = vpack.c.b16 %v698, %v694
    %v1155 = vpack.c.b16 %v703, %v699
    %v1156 = vpack.c.b16 %v704, %v700
    %v1157 = vpack.c.b16 %v705, %v701
    %v1158 = vpack.c.b16 %v706, %v702
    %v1159 = vpack.c.b16 %v711, %v707
    %v1160 = vpack.c.b16 %v712, %v708
    %v1161 = vpack.c.b16 %v713, %v709
    %v1162 = vpack.c.b16 %v714, %v710
    %v1163 = vpack.c.b16 %v719, %v715
    %v1164 = vpack.c.b16 %v720, %v716
    %v1165 = vpack.c.b16 %v721, %v717
    %v1166 = vpack.c.b16 %v722, %v718
    %v1167 = vpack.c.b16 %v727, %v723
    %v1168 = vpack.c.b16 %v728, %v724
    %v1169 = vpack.c.b16 %v729, %v725
    %v1170 = vpack.c.b16 %v730, %v726
    %v1171 = vpack.c.b16 %v735, %v731
    %v1172 = vpack.c.b16 %v736, %v732
    %v1173 = vpack.c.b16 %v737, %v733
    %v1174 = vpack.c.b16 %v738, %v734
    %v1175 = vpack.c.b16 %v743, %v739
    %v1176 = vpack.c.b16 %v744, %v740
    %v1177 = vpack.c.b16 %v745, %v741
    %v1178 = vpack.c.b16 %v746, %v742
    %v1179 = vpack.c.b16 %v751, %v747
    %v1180 = vpack.c.b16 %v752, %v748
    %v1181 = vpack.c.b16 %v753, %v749
    %v1182 = vpack.c.b16 %v754, %v750
    %v1183 = vpack.c.b16 %v759, %v755
    %v1184 = vpack.c.b16 %v760, %v756
    %v1185 = vpack.c.b16 %v761, %v757
    %v1186 = vpack.c.b16 %v762, %v758
    %v1187 = vpack.c.b16 %v767, %v763
    %v1188 = vpack.c.b16 %v768, %v764
    %v1189 = vpack.c.b16 %v769, %v765
    %v1190 = vpack.c.b16 %v770, %v766
    %v1191 = vpack.c.b16 %v775, %v771
    %v1192 = vpack.c.b16 %v776, %v772
    %v1193 = vpack.c.b16 %v777, %v773
    %v1194 = vpack.c.b16 %v778, %v774
    %v1195 = vpack.c.b16 %v783, %v779
    %v1196 = vpack.c.b16 %v784, %v780
    %v1197 = vpack.c.b16 %v785, %v781
    %v1198 = vpack.c.b16 %v786, %v782
    %v1199 = vpack.c.b16 %v791, %v787
    %v1200 = vpack.c.b16 %v792, %v788
    %v1201 = vpack.c.b16 %v793, %v789
    %v1202 = vpack.c.b16 %v794, %v790
    %v1203 = vpack.c.b16 %v799, %v795
    %v1204 = vpack.c.b16 %v800, %v796
    %v1205 = vpack.c.b16 %v801, %v797
    %v1206 = vpack.c.b16 %v802, %v798
    %v1207 = vpack.c.b16 %v807, %v803
    %v1208 = vpack.c.b16 %v808, %v804
    %v1209 = vpack.c.b16 %v809, %v805
    %v1210 = vpack.c.b16 %v810, %v806
    %v1211 = vpack.c.b16 %v815, %v811
    %v1212 = vpack.c.b16 %v816, %v812
    %v1213 = vpack.c.b16 %v817, %v813
    %v1214 = vpack.c.b16 %v818, %v814
    %v1215 = vpack.c.b16 %v823, %v819
    %v1216 = vpack.c.b16 %v824, %v820
    %v1217 = vpack.c.b16 %v825, %v821
    %v1218 = vpack.c.b16 %v826, %v822
    %v1219 = vpack.c.b16 %v831, %v827
    %v1220 = vpack.c.b16 %v832, %v828
    %v1221 = vpack.c.b16 %v833, %v829
    %v1222 = vpack.c.b16 %v834, %v830
    %v1223 = vpack.c.b16 %v839, %v835
    %v1224 = vpack.c.b16 %v840, %v836
    %v1225 = vpack.c.b16 %v841, %v837
    %v1226 = vpack.c.b16 %v842, %v838
    %v1227 = vpack.c.b16 %v847, %v843
    %v1228 = vpack.c.b16 %v848, %v844
    %v1229 = vpack.c.b16 %v849, %v845
    %v1230 = vpack.c.b16 %v850, %v846
    %v1231 = vpack.c.b16 %v855, %v851
    %v1232 = vpack.c.b16 %v856, %v852
    %v1233 = vpack.c.b16 %v857, %v853
    %v1234 = vpack.c.b16 %v858, %v854
    %v1235 = vpack.c.b16 %v863, %v859
    %v1236 = vpack.c.b16 %v864, %v860
    %v1237 = vpack.c.b16 %v865, %v861
    %v1238 = vpack.c.b16 %v866, %v862
    %v1239 = vpack.c.b16 %v871, %v867
    %v1240 = vpack.c.b16 %v872, %v868
    %v1241 = vpack.c.b16 %v873, %v869
    %v1242 = vpack.c.b16 %v874, %v870
    %v1243 = vpack.c.b16 %v879, %v875
    %v1244 = vpack.c.b16 %v880, %v876
    %v1245 = vpack.c.b16 %v881, %v877
    %v1246 = vpack.c.b16 %v882, %v878
    %v1247 = vpack.c.b16 %v887, %v883
    %v1248 = vpack.c.b16 %v888, %v884
    %v1249 = vpack.c.b16 %v889, %v885
    %v1250 = vpack.c.b16 %v890, %v886
    %v1251 = vpack.c.b16 %v895, %v891
    %v1252 = vpack.c.b16 %v896, %v892
    %v1253 = vpack.c.b16 %v897, %v893
    %v1254 = vpack.c.b16 %v898, %v894
    %v1255 = vpack.c.b16 %v903, %v899
    %v1256 = vpack.c.b16 %v904, %v900
    %v1257 = vpack.c.b16 %v905, %v901
    %v1258 = vpack.c.b16 %v906, %v902
    %v1259 = vpack.c.b16 %v911, %v907
    %v1260 = vpack.c.b16 %v912, %v908
    %v1261 = vpack.c.b16 %v913, %v909
    %v1262 = vpack.c.b16 %v914, %v910
    %v1263 = vpack.c.b16 %v919, %v915
    %v1264 = vpack.c.b16 %v920, %v916
    %v1265 = vpack.c.b16 %v921, %v917
    %v1266 = vpack.c.b16 %v922, %v918
    %v1267 = vpack.c.b16 %v927, %v923
    %v1268 = vpack.c.b16 %v928, %v924
    %v1269 = vpack.c.b16 %v929, %v925
    %v1270 = vpack.c.b16 %v930, %v926
    %v1271 = vpack.c.b16 %v935, %v931
    %v1272 = vpack.c.b16 %v936, %v932
    %v1273 = vpack.c.b16 %v937, %v933
    %v1274 = vpack.c.b16 %v938, %v934
    %v1275 = vpack.c.b16 %v943, %v939
    %v1276 = vpack.c.b16 %v944, %v940
    %v1277 = vpack.c.b16 %v945, %v941
    %v1278 = vpack.c.b16 %v946, %v942
    %v1279 = vpack.c.b16 %v951, %v947
    %v1280 = vpack.c.b16 %v952, %v948
    %v1281 = vpack.c.b16 %v953, %v949
    %v1282 = vpack.c.b16 %v954, %v950
    %v1283 = vpack.c.b16 %v959, %v955
    %v1284 = vpack.c.b16 %v960, %v956
    %v1285 = vpack.c.b16 %v961, %v957
    %v1286 = vpack.c.b16 %v962, %v958
    %v1287 = vpack.c.b16 %v967, %v963
    %v1288 = vpack.c.b16 %v968, %v964
    %v1289 = vpack.c.b16 %v969, %v965
    %v1290 = vpack.c.b16 %v970, %v966
    %v1291 = vpack.c.b16 %v975, %v971
    %v1292 = vpack.c.b16 %v976, %v972
    %v1293 = vpack.c.b16 %v977, %v973
    %v1294 = vpack.c.b16 %v978, %v974
    %v1295 = vpack.c.b16 %v983, %v979
    %v1296 = vpack.c.b16 %v984, %v980
    %v1297 = vpack.c.b16 %v985, %v981
    %v1298 = vpack.c.b16 %v986, %v982
    %v1299 = vpack.c.b16 %v991, %v987
    %v1300 = vpack.c.b16 %v992, %v988
    %v1301 = vpack.c.b16 %v993, %v989
    %v1302 = vpack.c.b16 %v994, %v990
    %v1303 = vpack.c.b16 %v999, %v995
    %v1304 = vpack.c.b16 %v1000, %v996
    %v1305 = vpack.c.b16 %v1001, %v997
    %v1306 = vpack.c.b16 %v1002, %v998
    %v1307 = vpack.c.b16 %v1007, %v1003
    %v1308 = vpack.c.b16 %v1008, %v1004
    %v1309 = vpack.c.b16 %v1009, %v1005
    %v1310 = vpack.c.b16 %v1010, %v1006
    %v1311 = vpack.c.b16 %v1015, %v1011
    %v1312 = vpack.c.b16 %v1016, %v1012
    %v1313 = vpack.c.b16 %v1017, %v1013
    %v1314 = vpack.c.b16 %v1018, %v1014
    %v1315 = vpack.c.b16 %v1023, %v1019
    %v1316 = vpack.c.b16 %v1024, %v1020
    %v1317 = vpack.c.b16 %v1025, %v1021
    %v1318 = vpack.c.b16 %v1026, %v1022
    %v1319 = vpack.c.b16 %v1031, %v1027
    %v1320 = vpack.c.b16 %v1032, %v1028
    %v1321 = vpack.c.b16 %v1033, %v1029
    %v1322 = vpack.c.b16 %v1034, %v1030
    %v1323 = vpack.c.b16 %v1039, %v1035
    %v1324 = vpack.c.b16 %v1040, %v1036
    %v1325 = vpack.c.b16 %v1041, %v1037
    %v1326 = vpack.c.b16 %v1042, %v1038
    %v1327 = vpack.c.b16 %v1047, %v1043
    %v1328 = vpack.c.b16 %v1048, %v1044
    %v1329 = vpack.c.b16 %v1049, %v1045
    %v1330 = vpack.c.b16 %v1050, %v1046
    %v1331 = vpack.c.b16 %v1055, %v1051
    %v1332 = vpack.c.b16 %v1056, %v1052
    %v1333 = vpack.c.b16 %v1057, %v1053
    %v1334 = vpack.c.b16 %v1058, %v1054
    %v1335 = vpack.c.b16 %v1063, %v1059
    %v1336 = vpack.c.b16 %v1064, %v1060
    %v1337 = vpack.c.b16 %v1065, %v1061
    %v1338 = vpack.c.b16 %v1066, %v1062
    %v1339 = vpack.c.b16 %v1071, %v1067
    %v1340 = vpack.c.b16 %v1072, %v1068
    %v1341 = vpack.c.b16 %v1073, %v1069
    %v1342 = vpack.c.b16 %v1074, %v1070
    %v1343 = vpack.c.b16 %v1079, %v1075
    %v1344 = vpack.c.b16 %v1080, %v1076
    %v1345 = vpack.c.b16 %v1081, %v1077
    %v1346 = vpack.c.b16 %v1082, %v1078
    %v1347 = vpack.c.b16 %v1087, %v1083
    %v1348 = vpack.c.b16 %v1088, %v1084
    %v1349 = vpack.c.b16 %v1089, %v1085
    %v1350 = vpack.c.b16 %v1090, %v1086
    %v1351 = vpack.c.b16 %v1095, %v1091
    %v1352 = vpack.c.b16 %v1096, %v1092
    %v1353 = vpack.c.b16 %v1097, %v1093
    %v1354 = vpack.c.b16 %v1098, %v1094
    %v1355 = vpack.c.b16 %v1103, %v1099
    %v1356 = vpack.c.b16 %v1104, %v1100
    %v1357 = vpack.c.b16 %v1105, %v1101
    %v1358 = vpack.c.b16 %v1106, %v1102
    %v1359 = vpack.c.b16 %v1107, %v1107
    %v1360 = vpack.c.b16 %v1108, %v1108
    %v1361 = vpack.c.b16 %v1109, %v1109
    %v1362 = vpack.c.b16 %v1110, %v1110
    %vm1611 = vcmask 850944
    %v1613 = vsel %vm1611, %v88, 0
    %vm1615 = vcmask 1043456
    %v1617 = vsel %vm1615, %v1359, 0
    %v1620 = vsel %vm1615, %v1360, 0
    %v1623 = vsel %vm1615, %v1361, 0
    %v1626 = vsel %vm1615, %v1362, 0
    %1628 = vmatprep.subr.bf16.mxu0 %v1140
    %1629 = vmatpush1.bf16.msra.mxu0 %v1139
    %1630 = vmatprep.subr.bf16.mxu0 %v1136
    %1631 = vmatpush1.bf16.msra.mxu0 %v1135
    %1632 = vmatprep.subr.bf16.mxu0 %v1132
    %1633 = vmatpush1.bf16.msra.mxu0 %v1131
    %1634 = vmatprep.subr.bf16.mxu0 %v1128
    %1635 = vmatpush1.bf16.msra.mxu0 %v1127
    %1636 = vmatprep.subr.bf16.mxu0 %v1124
    %1637 = vmatpush1.bf16.msra.mxu0 %v1123
    %1638 = vmatprep.subr.bf16.mxu0 %v1120
    %1639 = vmatpush1.bf16.msra.mxu0 %v1119
    %1640 = vmatprep.subr.bf16.mxu0 %v1116
    %1641 = vmatpush1.bf16.msra.mxu0 %v1115
    %1642 = vmatprep.subr.bf16.mxu0 %v1112
    %1643 = vmatpush1.bf16.msra.mxu0 %v1111
    %1644 = vmatprep.subr.bf16.mxu0 %v1172
    %1645 = vmatpush2.bf16.msra.mxu0 %v1171
    %1646 = vmatprep.subr.bf16.mxu0 %v1168
    %1647 = vmatpush2.bf16.msra.mxu0 %v1167
    %1648 = vmatprep.subr.bf16.mxu0 %v1164
    %1649 = vmatpush2.bf16.msra.mxu0 %v1163
    %1650 = vmatprep.subr.bf16.mxu0 %v1160
    %1651 = vmatpush2.bf16.msra.mxu0 %v1159
    %1652 = vmatprep.subr.bf16.mxu0 %v1156
    %1653 = vmatpush2.bf16.msra.mxu0 %v1155
    %1654 = vmatprep.subr.bf16.mxu0 %v1152
    %1655 = vmatpush2.bf16.msra.mxu0 %v1151
    %1656 = vmatprep.subr.bf16.mxu0 %v1148
    %1657 = vmatpush2.bf16.msra.mxu0 %v1147
    %1658 = vmatprep.subr.bf16.mxu0 %v1144
    %1659 = vmatpush2.bf16.msra.mxu0 %v1143
    %1660 = vmatprep.mubr.bf16.mxu0 %v82
    %1661 = vmatmul.mubr.bf16.gmra.mxu0 %v81
    %v1662 = vpop.f32.mrf.mxu0
    %v1663 = vadd.f32 %v344, %v1662
    %v1664 = vpop.f32.mrf.mxu0
    %v1665 = vadd.f32 %v348, %v1664
    %v1666 = vpop.f32.mrf.mxu0
    %v1667 = vpop.f32.mrf.mxu0
    %1668 = vdwg.mxu0
    %1669 = vmatprep.subr.bf16.mxu0 %v1204
    %1670 = vmatpush1.bf16.msra.mxu0 %v1203
    %1671 = vmatprep.subr.bf16.mxu0 %v1200
    %1672 = vmatpush1.bf16.msra.mxu0 %v1199
    %1673 = vmatprep.subr.bf16.mxu0 %v1196
    %1674 = vmatpush1.bf16.msra.mxu0 %v1195
    %1675 = vmatprep.subr.bf16.mxu0 %v1192
    %1676 = vmatpush1.bf16.msra.mxu0 %v1191
    %1677 = vmatprep.subr.bf16.mxu0 %v1188
    %1678 = vmatpush1.bf16.msra.mxu0 %v1187
    %1679 = vmatprep.subr.bf16.mxu0 %v1184
    %1680 = vmatpush1.bf16.msra.mxu0 %v1183
    %1681 = vmatprep.subr.bf16.mxu0 %v1180
    %1682 = vmatpush1.bf16.msra.mxu0 %v1179
    %1683 = vmatprep.subr.bf16.mxu0 %v1176
    %1684 = vmatpush1.bf16.msra.mxu0 %v1175
    %1685 = vmatprep.subr.bf16.mxu0 %v1236
    %1686 = vmatpush2.bf16.msra.mxu0 %v1235
    %1687 = vmatprep.subr.bf16.mxu0 %v1232
    %1688 = vmatpush2.bf16.msra.mxu0 %v1231
    %1689 = vmatprep.subr.bf16.mxu0 %v1228
    %1690 = vmatpush2.bf16.msra.mxu0 %v1227
    %1691 = vmatprep.subr.bf16.mxu0 %v1224
    %1692 = vmatpush2.bf16.msra.mxu0 %v1223
    %1693 = vmatprep.subr.bf16.mxu0 %v1220
    %1694 = vmatpush2.bf16.msra.mxu0 %v1219
    %1695 = vmatprep.subr.bf16.mxu0 %v1216
    %1696 = vmatpush2.bf16.msra.mxu0 %v1215
    %1697 = vmatprep.subr.bf16.mxu0 %v1212
    %1698 = vmatpush2.bf16.msra.mxu0 %v1211
    %1699 = vmatprep.subr.bf16.mxu0 %v1208
    %1700 = vmatpush2.bf16.msra.mxu0 %v1207
    %1701 = vmatprep.mubr.bf16.mxu0 %v84
    %1702 = vmatmul.mubr.bf16.gmra.mxu0 %v83
    %v1703 = vpop.f32.mrf.mxu0
    %v1704 = vadd.f32 %v1663, %v1703
    %v1705 = vpop.f32.mrf.mxu0
    %v1706 = vadd.f32 %v1665, %v1705
    %v1707 = vpop.f32.mrf.mxu0
    %v1708 = vpop.f32.mrf.mxu0
    %1709 = vdwg.mxu0
    %1710 = vmatprep.subr.bf16.mxu0 %v1268
    %1711 = vmatpush1.bf16.msra.mxu0 %v1267
    %1712 = vmatprep.subr.bf16.mxu0 %v1264
    %1713 = vmatpush1.bf16.msra.mxu0 %v1263
    %1714 = vmatprep.subr.bf16.mxu0 %v1260
    %1715 = vmatpush1.bf16.msra.mxu0 %v1259
    %1716 = vmatprep.subr.bf16.mxu0 %v1256
    %1717 = vmatpush1.bf16.msra.mxu0 %v1255
    %1718 = vmatprep.subr.bf16.mxu0 %v1252
    %1719 = vmatpush1.bf16.msra.mxu0 %v1251
    %1720 = vmatprep.subr.bf16.mxu0 %v1248
    %1721 = vmatpush1.bf16.msra.mxu0 %v1247
    %1722 = vmatprep.subr.bf16.mxu0 %v1244
    %1723 = vmatpush1.bf16.msra.mxu0 %v1243
    %1724 = vmatprep.subr.bf16.mxu0 %v1240
    %1725 = vmatpush1.bf16.msra.mxu0 %v1239
    %1726 = vmatprep.subr.bf16.mxu0 %v1300
    %1727 = vmatpush2.bf16.msra.mxu0 %v1299
    %1728 = vmatprep.subr.bf16.mxu0 %v1296
    %1729 = vmatpush2.bf16.msra.mxu0 %v1295
    %1730 = vmatprep.subr.bf16.mxu0 %v1292
    %1731 = vmatpush2.bf16.msra.mxu0 %v1291
    %1732 = vmatprep.subr.bf16.mxu0 %v1288
    %1733 = vmatpush2.bf16.msra.mxu0 %v1287
    %1734 = vmatprep.subr.bf16.mxu0 %v1284
    %1735 = vmatpush2.bf16.msra.mxu0 %v1283
    %1736 = vmatprep.subr.bf16.mxu0 %v1280
    %1737 = vmatpush2.bf16.msra.mxu0 %v1279
    %1738 = vmatprep.subr.bf16.mxu0 %v1276
    %1739 = vmatpush2.bf16.msra.mxu0 %v1275
    %1740 = vmatprep.subr.bf16.mxu0 %v1272
    %1741 = vmatpush2.bf16.msra.mxu0 %v1271
    %1742 = vmatprep.mubr.bf16.mxu0 %v86
    %1743 = vmatmul.mubr.bf16.gmra.mxu0 %v85
    %v1744 = vpop.f32.mrf.mxu0
    %v1745 = vadd.f32 %v1704, %v1744
    %v1746 = vpop.f32.mrf.mxu0
    %v1747 = vadd.f32 %v1706, %v1746
    %v1748 = vpop.f32.mrf.mxu0
    %v1749 = vpop.f32.mrf.mxu0
    %1750 = vdwg.mxu0
    %1751 = vmatprep.subr.bf16.mxu0 %v1332
    %1752 = vmatpush1.bf16.msra.mxu0 %v1331
    %1753 = vmatprep.subr.bf16.mxu0 %v1328
    %1754 = vmatpush1.bf16.msra.mxu0 %v1327
    %1755 = vmatprep.subr.bf16.mxu0 %v1324
    %1756 = vmatpush1.bf16.msra.mxu0 %v1323
    %1757 = vmatprep.subr.bf16.mxu0 %v1320
    %1758 = vmatpush1.bf16.msra.mxu0 %v1319
    %1759 = vmatprep.subr.bf16.mxu0 %v1316
    %1760 = vmatpush1.bf16.msra.mxu0 %v1315
    %1761 = vmatprep.subr.bf16.mxu0 %v1312
    %1762 = vmatpush1.bf16.msra.mxu0 %v1311
    %1763 = vmatprep.subr.bf16.mxu0 %v1308
    %1764 = vmatpush1.bf16.msra.mxu0 %v1307
    %1765 = vmatprep.subr.bf16.mxu0 %v1304
    %1766 = vmatpush1.bf16.msra.mxu0 %v1303
    %1767 = vmatprep.subr.bf16.mxu0 0
    %1768 = vmatpush2.bf16.msra.mxu0 0
    %1769 = vmatprep.subr.bf16.mxu0 %v1620
    %1770 = vmatpush2.bf16.msra.mxu0 %v1617
    %1771 = vmatprep.subr.bf16.mxu0 %v1356
    %1772 = vmatpush2.bf16.msra.mxu0 %v1355
    %1773 = vmatprep.subr.bf16.mxu0 %v1352
    %1774 = vmatpush2.bf16.msra.mxu0 %v1351
    %1775 = vmatprep.subr.bf16.mxu0 %v1348
    %1776 = vmatpush2.bf16.msra.mxu0 %v1347
    %1777 = vmatprep.subr.bf16.mxu0 %v1344
    %1778 = vmatpush2.bf16.msra.mxu0 %v1343
    %1779 = vmatprep.subr.bf16.mxu0 %v1340
    %1780 = vmatpush2.bf16.msra.mxu0 %v1339
    %1781 = vmatprep.subr.bf16.mxu0 %v1336
    %1782 = vmatpush2.bf16.msra.mxu0 %v1335
    %1783 = vmatprep.mubr.bf16.mxu0 %v1613
    %1784 = vmatmul.mubr.bf16.gmra.mxu0 %v87
    %v1785 = vpop.f32.mrf.mxu0
    %v1786 = vadd.f32 %v1745, %v1785
    %v1787 = vpop.f32.mrf.mxu0
    %v1788 = vadd.f32 %v1747, %v1787
    %v1789 = vpop.f32.mrf.mxu0
    %v1790 = vpop.f32.mrf.mxu0
    %1791 = vdwg.mxu0
    %1792 = vmatprep.subr.bf16.mxu0 %v1142
    %1793 = vmatpush1.bf16.msra.mxu0 %v1141
    %1794 = vmatprep.subr.bf16.mxu0 %v1138
    %1795 = vmatpush1.bf16.msra.mxu0 %v1137
    %1796 = vmatprep.subr.bf16.mxu0 %v1134
    %1797 = vmatpush1.bf16.msra.mxu0 %v1133
    %1798 = vmatprep.subr.bf16.mxu0 %v1130
    %1799 = vmatpush1.bf16.msra.mxu0 %v1129
    %1800 = vmatprep.subr.bf16.mxu0 %v1126
    %1801 = vmatpush1.bf16.msra.mxu0 %v1125
    %1802 = vmatprep.subr.bf16.mxu0 %v1122
    %1803 = vmatpush1.bf16.msra.mxu0 %v1121
    %1804 = vmatprep.subr.bf16.mxu0 %v1118
    %1805 = vmatpush1.bf16.msra.mxu0 %v1117
    %1806 = vmatprep.subr.bf16.mxu0 %v1114
    %1807 = vmatpush1.bf16.msra.mxu0 %v1113
    %1808 = vmatprep.subr.bf16.mxu0 %v1174
    %1809 = vmatpush2.bf16.msra.mxu0 %v1173
    %1810 = vmatprep.subr.bf16.mxu0 %v1170
    %1811 = vmatpush2.bf16.msra.mxu0 %v1169
    %1812 = vmatprep.subr.bf16.mxu0 %v1166
    %1813 = vmatpush2.bf16.msra.mxu0 %v1165
    %1814 = vmatprep.subr.bf16.mxu0 %v1162
    %1815 = vmatpush2.bf16.msra.mxu0 %v1161
    %1816 = vmatprep.subr.bf16.mxu0 %v1158
    %1817 = vmatpush2.bf16.msra.mxu0 %v1157
    %1818 = vmatprep.subr.bf16.mxu0 %v1154
    %1819 = vmatpush2.bf16.msra.mxu0 %v1153
    %1820 = vmatprep.subr.bf16.mxu0 %v1150
    %1821 = vmatpush2.bf16.msra.mxu0 %v1149
    %1822 = vmatprep.subr.bf16.mxu0 %v1146
    %1823 = vmatpush2.bf16.msra.mxu0 %v1145
    %1824 = vmatprep.mubr.bf16.mxu0 %v82
    %1825 = vmatmul.mubr.bf16.gmra.mxu0 %v81
    %v1826 = vpop.f32.mrf.mxu0
    %v1827 = vadd.f32 %v352, %v1826
    %v1828 = vpop.f32.mrf.mxu0
    %v1829 = vadd.f32 %v356, %v1828
    %v1830 = vpop.f32.mrf.mxu0
    %v1831 = vpop.f32.mrf.mxu0
    %1832 = vdwg.mxu0
    %1833 = vmatprep.subr.bf16.mxu0 %v1206
    %1834 = vmatpush1.bf16.msra.mxu0 %v1205
    %1835 = vmatprep.subr.bf16.mxu0 %v1202
    %1836 = vmatpush1.bf16.msra.mxu0 %v1201
    %1837 = vmatprep.subr.bf16.mxu0 %v1198
    %1838 = vmatpush1.bf16.msra.mxu0 %v1197
    %1839 = vmatprep.subr.bf16.mxu0 %v1194
    %1840 = vmatpush1.bf16.msra.mxu0 %v1193
    %1841 = vmatprep.subr.bf16.mxu0 %v1190
    %1842 = vmatpush1.bf16.msra.mxu0 %v1189
    %1843 = vmatprep.subr.bf16.mxu0 %v1186
    %1844 = vmatpush1.bf16.msra.mxu0 %v1185
    %1845 = vmatprep.subr.bf16.mxu0 %v1182
    %1846 = vmatpush1.bf16.msra.mxu0 %v1181
    %1847 = vmatprep.subr.bf16.mxu0 %v1178
    %1848 = vmatpush1.bf16.msra.mxu0 %v1177
    %1849 = vmatprep.subr.bf16.mxu0 %v1238
    %1850 = vmatpush2.bf16.msra.mxu0 %v1237
    %1851 = vmatprep.subr.bf16.mxu0 %v1234
    %1852 = vmatpush2.bf16.msra.mxu0 %v1233
    %1853 = vmatprep.subr.bf16.mxu0 %v1230
    %1854 = vmatpush2.bf16.msra.mxu0 %v1229
    %1855 = vmatprep.subr.bf16.mxu0 %v1226
    %1856 = vmatpush2.bf16.msra.mxu0 %v1225
    %1857 = vmatprep.subr.bf16.mxu0 %v1222
    %1858 = vmatpush2.bf16.msra.mxu0 %v1221
    %1859 = vmatprep.subr.bf16.mxu0 %v1218
    %1860 = vmatpush2.bf16.msra.mxu0 %v1217
    %1861 = vmatprep.subr.bf16.mxu0 %v1214
    %1862 = vmatpush2.bf16.msra.mxu0 %v1213
    %1863 = vmatprep.subr.bf16.mxu0 %v1210
    %1864 = vmatpush2.bf16.msra.mxu0 %v1209
    %1865 = vmatprep.mubr.bf16.mxu0 %v84
    %1866 = vmatmul.mubr.bf16.gmra.mxu0 %v83
    %v1867 = vpop.f32.mrf.mxu0
    %v1868 = vadd.f32 %v1827, %v1867
    %v1869 = vpop.f32.mrf.mxu0
    %v1870 = vadd.f32 %v1829, %v1869
    %v1871 = vpop.f32.mrf.mxu0
    %v1872 = vpop.f32.mrf.mxu0
    %1873 = vdwg.mxu0
    %1874 = vmatprep.subr.bf16.mxu0 %v1270
    %1875 = vmatpush1.bf16.msra.mxu0 %v1269
    %1876 = vmatprep.subr.bf16.mxu0 %v1266
    %1877 = vmatpush1.bf16.msra.mxu0 %v1265
    %1878 = vmatprep.subr.bf16.mxu0 %v1262
    %1879 = vmatpush1.bf16.msra.mxu0 %v1261
    %1880 = vmatprep.subr.bf16.mxu0 %v1258
    %1881 = vmatpush1.bf16.msra.mxu0 %v1257
    %1882 = vmatprep.subr.bf16.mxu0 %v1254
    %1883 = vmatpush1.bf16.msra.mxu0 %v1253
    %1884 = vmatprep.subr.bf16.mxu0 %v1250
    %1885 = vmatpush1.bf16.msra.mxu0 %v1249
    %1886 = vmatprep.subr.bf16.mxu0 %v1246
    %1887 = vmatpush1.bf16.msra.mxu0 %v1245
    %1888 = vmatprep.subr.bf16.mxu0 %v1242
    %1889 = vmatpush1.bf16.msra.mxu0 %v1241
    %1890 = vmatprep.subr.bf16.mxu0 %v1302
    %1891 = vmatpush2.bf16.msra.mxu0 %v1301
    %1892 = vmatprep.subr.bf16.mxu0 %v1298
    %1893 = vmatpush2.bf16.msra.mxu0 %v1297
    %1894 = vmatprep.subr.bf16.mxu0 %v1294
    %1895 = vmatpush2.bf16.msra.mxu0 %v1293
    %1896 = vmatprep.subr.bf16.mxu0 %v1290
    %1897 = vmatpush2.bf16.msra.mxu0 %v1289
    %1898 = vmatprep.subr.bf16.mxu0 %v1286
    %1899 = vmatpush2.bf16.msra.mxu0 %v1285
    %1900 = vmatprep.subr.bf16.mxu0 %v1282
    %1901 = vmatpush2.bf16.msra.mxu0 %v1281
    %1902 = vmatprep.subr.bf16.mxu0 %v1278
    %1903 = vmatpush2.bf16.msra.mxu0 %v1277
    %1904 = vmatprep.subr.bf16.mxu0 %v1274
    %1905 = vmatpush2.bf16.msra.mxu0 %v1273
    %1906 = vmatprep.mubr.bf16.mxu0 %v86
    %1907 = vmatmul.mubr.bf16.gmra.mxu0 %v85
    %v1908 = vpop.f32.mrf.mxu0
    %v1909 = vadd.f32 %v1868, %v1908
    %v1910 = vpop.f32.mrf.mxu0
    %v1911 = vadd.f32 %v1870, %v1910
    %v1912 = vpop.f32.mrf.mxu0
    %v1913 = vpop.f32.mrf.mxu0
    %1914 = vdwg.mxu0
    %1915 = vmatprep.subr.bf16.mxu0 %v1334
    %1916 = vmatpush1.bf16.msra.mxu0 %v1333
    %1917 = vmatprep.subr.bf16.mxu0 %v1330
    %1918 = vmatpush1.bf16.msra.mxu0 %v1329
    %1919 = vmatprep.subr.bf16.mxu0 %v1326
    %1920 = vmatpush1.bf16.msra.mxu0 %v1325
    %1921 = vmatprep.subr.bf16.mxu0 %v1322
    %1922 = vmatpush1.bf16.msra.mxu0 %v1321
    %1923 = vmatprep.subr.bf16.mxu0 %v1318
    %1924 = vmatpush1.bf16.msra.mxu0 %v1317
    %1925 = vmatprep.subr.bf16.mxu0 %v1314
    %1926 = vmatpush1.bf16.msra.mxu0 %v1313
    %1927 = vmatprep.subr.bf16.mxu0 %v1310
    %1928 = vmatpush1.bf16.msra.mxu0 %v1309
    %1929 = vmatprep.subr.bf16.mxu0 %v1306
    %1930 = vmatpush1.bf16.msra.mxu0 %v1305
    %1931 = vmatprep.subr.bf16.mxu0 0
    %1932 = vmatpush2.bf16.msra.mxu0 0
    %1933 = vmatprep.subr.bf16.mxu0 %v1626
    %1934 = vmatpush2.bf16.msra.mxu0 %v1623
    %1935 = vmatprep.subr.bf16.mxu0 %v1358
    %1936 = vmatpush2.bf16.msra.mxu0 %v1357
    %1937 = vmatprep.subr.bf16.mxu0 %v1354
    %1938 = vmatpush2.bf16.msra.mxu0 %v1353
    %1939 = vmatprep.subr.bf16.mxu0 %v1350
    %1940 = vmatpush2.bf16.msra.mxu0 %v1349
    %1941 = vmatprep.subr.bf16.mxu0 %v1346
    %1942 = vmatpush2.bf16.msra.mxu0 %v1345
    %1943 = vmatprep.subr.bf16.mxu0 %v1342
    %1944 = vmatpush2.bf16.msra.mxu0 %v1341
    %1945 = vmatprep.subr.bf16.mxu0 %v1338
    %1946 = vmatpush2.bf16.msra.mxu0 %v1337
    %1947 = vmatprep.mubr.bf16.mxu0 %v1613
    %1948 = vmatmul.mubr.bf16.gmra.mxu0 %v87
    %v1949 = vpop.f32.mrf.mxu0
    %v1950 = vadd.f32 %v1909, %v1949
    %v1951 = vpop.f32.mrf.mxu0
    %v1952 = vadd.f32 %v1911, %v1951
    %v1953 = vpop.f32.mrf.mxu0
    %v1954 = vpop.f32.mrf.mxu0
    %1955 = vdwg.mxu0
    %v1956 = vmax.f32 %v1786, 0.0
    %v1957 = vmax.f32 %v1788, 0.0
    %v1958 = vmax.f32 %v1950, 0.0
    %v1959 = vmax.f32 %v1952, 0.0
    %v1960 = vpack.c.bf16 %v1956, %v1956
    %v1961 = vpack.c.bf16 %v1957, %v1957
    %v1962 = vpack.c.bf16 %v1958, %v1958
    %v1963 = vpack.c.bf16 %v1959, %v1959
    %v1964 = vld [vmem:[#allocation8] sm:$0xf]
    %v1965 = vld [vmem:[#allocation8 + $0x4] sm:$0xf]
    %v1966 = vld [vmem:[#allocation8 + $0x8] sm:$0xf]
    %v1967 = vld [vmem:[#allocation8 + $0xc] sm:$0xf]
    %v1968 = vld [vmem:[#allocation8 + $0x10] sm:$0xf]
    %v1969 = vld [vmem:[#allocation8 + $0x14] sm:$0xf]
    %v1970 = vld [vmem:[#allocation8 + $0x18] sm:$0xf]
    %v1971 = vld [vmem:[#allocation8 + $0x1c] sm:$0xf]
    %v1972 = vld [vmem:[#allocation8 + $0x20] sm:$0xf]
    %v1973 = vld [vmem:[#allocation8 + $0x24] sm:$0xf]
    %v1974 = vld [vmem:[#allocation8 + $0x28] sm:$0xf]
    %v1975 = vld [vmem:[#allocation8 + $0x2c] sm:$0xf]
    %v1976 = vld [vmem:[#allocation8 + $0x30] sm:$0xf]
    %v1977 = vld [vmem:[#allocation8 + $0x34] sm:$0xf]
    %v1978 = vld [vmem:[#allocation8 + $0x38] sm:$0xf]
    %v1979 = vld [vmem:[#allocation8 + $0x3c] sm:$0xf]
    %v1980 = vld [vmem:[#allocation8 + $0x40] sm:$0xf]
    %v1981 = vld [vmem:[#allocation8 + $0x44] sm:$0xf]
    %v1982 = vld [vmem:[#allocation8 + $0x48] sm:$0xf]
    %v1983 = vld [vmem:[#allocation8 + $0x4c] sm:$0xf]
    %v1984 = vld [vmem:[#allocation8 + $0x50] sm:$0xf]
    %v1985 = vld [vmem:[#allocation8 + $0x54] sm:$0xf]
    %v1986 = vld [vmem:[#allocation8 + $0x58] sm:$0xf]
    %v1987 = vld [vmem:[#allocation8 + $0x5c] sm:$0xf]
    %v1988 = vld [vmem:[#allocation8 + $0x60] sm:$0xf]
    %v1989 = vld [vmem:[#allocation8 + $0x64] sm:$0xf]
    %v1990 = vld [vmem:[#allocation8 + $0x68] sm:$0xf]
    %v1991 = vld [vmem:[#allocation8 + $0x6c] sm:$0xf]
    %v1992 = vld [vmem:[#allocation8 + $0x70] sm:$0xf]
    %v1993 = vld [vmem:[#allocation8 + $0x74] sm:$0xf]
    %v1994 = vld [vmem:[#allocation8 + $0x78] sm:$0xf]
    %v1995 = vld [vmem:[#allocation8 + $0x7c] sm:$0xf]
    %v1996 = vld [vmem:[#allocation8 + $0x80] sm:$0xf]
    %v1997 = vld [vmem:[#allocation8 + $0x84] sm:$0xf]
    %v1998 = vld [vmem:[#allocation8 + $0x88] sm:$0xf]
    %v1999 = vld [vmem:[#allocation8 + $0x8c] sm:$0xf]
    %v2000 = vld [vmem:[#allocation8 + $0x90] sm:$0xf]
    %v2001 = vld [vmem:[#allocation8 + $0x94] sm:$0xf]
    %v2002 = vld [vmem:[#allocation8 + $0x98] sm:$0xf]
    %v2003 = vld [vmem:[#allocation8 + $0x9c] sm:$0xf]
    %v2004 = vld [vmem:[#allocation8 + $0xa0] sm:$0xf]
    %v2005 = vld [vmem:[#allocation8 + $0xa4] sm:$0xf]
    %v2006 = vld [vmem:[#allocation8 + $0xa8] sm:$0xf]
    %v2007 = vld [vmem:[#allocation8 + $0xac] sm:$0xf]
    %v2008 = vld [vmem:[#allocation8 + $0xb0] sm:$0xf]
    %v2009 = vld [vmem:[#allocation8 + $0xb4] sm:$0xf]
    %v2010 = vld [vmem:[#allocation8 + $0xb8] sm:$0xf]
    %v2011 = vld [vmem:[#allocation8 + $0xbc] sm:$0xf]
    %v2012 = vld [vmem:[#allocation8 + $0xc0] sm:$0xf]
    %v2013 = vld [vmem:[#allocation8 + $0xc4] sm:$0xf]
    %v2014 = vld [vmem:[#allocation8 + $0xc8] sm:$0xf]
    %v2015 = vld [vmem:[#allocation8 + $0xcc] sm:$0xf]
    %v2016 = vld [vmem:[#allocation8 + $0xd0] sm:$0xf]
    %v2017 = vld [vmem:[#allocation8 + $0xd4] sm:$0xf]
    %v2018 = vld [vmem:[#allocation8 + $0xd8] sm:$0xf]
    %v2019 = vld [vmem:[#allocation8 + $0xdc] sm:$0xf]
    %v2020 = vld [vmem:[#allocation8 + $0xe0] sm:$0xf]
    %v2021 = vld [vmem:[#allocation8 + $0xe4] sm:$0xf]
    %v2022 = vld [vmem:[#allocation8 + $0xe8] sm:$0xf]
    %v2023 = vld [vmem:[#allocation8 + $0xec] sm:$0xf]
    %v2024 = vld [vmem:[#allocation8 + $0xf0] sm:$0xf]
    %v2025 = vld [vmem:[#allocation8 + $0xf4] sm:$0xf]
    %v2026 = vld [vmem:[#allocation8 + $0xf8] sm:$0xf]
    %v2027 = vld [vmem:[#allocation8 + $0xfc] sm:$0xf]
    %v2028 = vld [vmem:[%s4] sm:$0x1]
    %v2030 = vlaneseq
    %v2031 = vshrl.u32 %v2030, 7
    %v2032 = vsub.s32 0, %v2031
    %v2033 = vrot.slane %v2028, %v2032
    %v2099 = vunpack.c.l.b16 %v1964
    %v2100 = vunpack.c.l.b16 %v1965
    %v2101 = vunpack.c.l.b16 %v1966
    %v2102 = vunpack.c.l.b16 %v1967
    %v2103 = vunpack.c.l.b16 %v1968
    %v2104 = vunpack.c.l.b16 %v1969
    %v2105 = vunpack.c.l.b16 %v1970
    %v2106 = vunpack.c.l.b16 %v1971
    %v2107 = vunpack.c.l.b16 %v1972
    %v2108 = vunpack.c.l.b16 %v1973
    %v2109 = vunpack.c.l.b16 %v1974
    %v2110 = vunpack.c.l.b16 %v1975
    %v2111 = vunpack.c.l.b16 %v1976
    %v2112 = vunpack.c.l.b16 %v1977
    %v2113 = vunpack.c.l.b16 %v1978
    %v2114 = vunpack.c.l.b16 %v1979
    %v2115 = vunpack.c.l.b16 %v1980
    %v2116 = vunpack.c.l.b16 %v1981
    %v2117 = vunpack.c.l.b16 %v1982
    %v2118 = vunpack.c.l.b16 %v1983
    %v2119 = vunpack.c.l.b16 %v1984
    %v2120 = vunpack.c.l.b16 %v1985
    %v2121 = vunpack.c.l.b16 %v1986
    %v2122 = vunpack.c.l.b16 %v1987
    %v2123 = vunpack.c.l.b16 %v1988
    %v2124 = vunpack.c.l.b16 %v1989
    %v2125 = vunpack.c.l.b16 %v1990
    %v2126 = vunpack.c.l.b16 %v1991
    %v2127 = vunpack.c.l.b16 %v1992
    %v2128 = vunpack.c.l.b16 %v1993
    %v2129 = vunpack.c.l.b16 %v1994
    %v2130 = vunpack.c.l.b16 %v1995
    %v2131 = vunpack.c.l.b16 %v1996
    %v2132 = vunpack.c.l.b16 %v1997
    %v2133 = vunpack.c.l.b16 %v1998
    %v2134 = vunpack.c.l.b16 %v1999
    %v2135 = vunpack.c.l.b16 %v2000
    %v2136 = vunpack.c.l.b16 %v2001
    %v2137 = vunpack.c.l.b16 %v2002
    %v2138 = vunpack.c.l.b16 %v2003
    %v2139 = vunpack.c.l.b16 %v2004
    %v2140 = vunpack.c.l.b16 %v2005
    %v2141 = vunpack.c.l.b16 %v2006
    %v2142 = vunpack.c.l.b16 %v2007
    %v2143 = vunpack.c.l.b16 %v2008
    %v2144 = vunpack.c.l.b16 %v2009
    %v2145 = vunpack.c.l.b16 %v2010
    %v2146 = vunpack.c.l.b16 %v2011
    %v2147 = vunpack.c.l.b16 %v2012
    %v2148 = vunpack.c.l.b16 %v2013
    %v2149 = vunpack.c.l.b16 %v2014
    %v2150 = vunpack.c.l.b16 %v2015
    %v2151 = vunpack.c.l.b16 %v2016
    %v2152 = vunpack.c.l.b16 %v2017
    %v2153 = vunpack.c.l.b16 %v2018
    %v2154 = vunpack.c.l.b16 %v2019
    %v2155 = vunpack.c.l.b16 %v2020
    %v2156 = vunpack.c.l.b16 %v2021
    %v2157 = vunpack.c.l.b16 %v2022
    %v2158 = vunpack.c.l.b16 %v2023
    %v2159 = vunpack.c.l.b16 %v2024
    %v2160 = vunpack.c.l.b16 %v2025
    %v2161 = vunpack.c.l.b16 %v2026
    %v2162 = vunpack.c.l.b16 %v2027
    %v2163 = vpack.c.b16 %v2100, %v2099
    %v2164 = vpack.c.b16 %v2102, %v2101
    %v2165 = vpack.c.b16 %v2104, %v2103
    %v2166 = vpack.c.b16 %v2106, %v2105
    %v2167 = vpack.c.b16 %v2108, %v2107
    %v2168 = vpack.c.b16 %v2110, %v2109
    %v2169 = vpack.c.b16 %v2112, %v2111
    %v2170 = vpack.c.b16 %v2114, %v2113
    %v2171 = vpack.c.b16 %v2116, %v2115
    %v2172 = vpack.c.b16 %v2118, %v2117
    %v2173 = vpack.c.b16 %v2120, %v2119
    %v2174 = vpack.c.b16 %v2122, %v2121
    %v2175 = vpack.c.b16 %v2124, %v2123
    %v2176 = vpack.c.b16 %v2126, %v2125
    %v2177 = vpack.c.b16 %v2128, %v2127
    %v2178 = vpack.c.b16 %v2130, %v2129
    %v2179 = vpack.c.b16 %v2132, %v2131
    %v2180 = vpack.c.b16 %v2134, %v2133
    %v2181 = vpack.c.b16 %v2136, %v2135
    %v2182 = vpack.c.b16 %v2138, %v2137
    %v2183 = vpack.c.b16 %v2140, %v2139
    %v2184 = vpack.c.b16 %v2142, %v2141
    %v2185 = vpack.c.b16 %v2144, %v2143
    %v2186 = vpack.c.b16 %v2146, %v2145
    %v2187 = vpack.c.b16 %v2148, %v2147
    %v2188 = vpack.c.b16 %v2150, %v2149
    %v2189 = vpack.c.b16 %v2152, %v2151
    %v2190 = vpack.c.b16 %v2154, %v2153
    %v2191 = vpack.c.b16 %v2156, %v2155
    %v2192 = vpack.c.b16 %v2158, %v2157
    %v2193 = vpack.c.b16 %v2160, %v2159
    %v2194 = vpack.c.b16 %v2162, %v2161
    %2227 = vmatprep.subr.bf16.mxu0 0
    %2228 = vmatpush1.bf16.msra.mxu0 %v2170
    %2229 = vmatprep.subr.bf16.mxu0 0
    %2230 = vmatpush1.bf16.msra.mxu0 %v2169
    %2231 = vmatprep.subr.bf16.mxu0 0
    %2232 = vmatpush1.bf16.msra.mxu0 %v2168
    %2233 = vmatprep.subr.bf16.mxu0 0
    %2234 = vmatpush1.bf16.msra.mxu0 %v2167
    %2235 = vmatprep.subr.bf16.mxu0 0
    %2236 = vmatpush1.bf16.msra.mxu0 %v2166
    %2237 = vmatprep.subr.bf16.mxu0 0
    %2238 = vmatpush1.bf16.msra.mxu0 %v2165
    %2239 = vmatprep.subr.bf16.mxu0 0
    %2240 = vmatpush1.bf16.msra.mxu0 %v2164
    %2241 = vmatprep.subr.bf16.mxu0 0
    %2242 = vmatpush1.bf16.msra.mxu0 %v2163
    %2243 = vmatprep.subr.bf16.mxu0 0
    %2244 = vmatpush2.bf16.msra.mxu0 %v2178
    %2245 = vmatprep.subr.bf16.mxu0 0
    %2246 = vmatpush2.bf16.msra.mxu0 %v2177
    %2247 = vmatprep.subr.bf16.mxu0 0
    %2248 = vmatpush2.bf16.msra.mxu0 %v2176
    %2249 = vmatprep.subr.bf16.mxu0 0
    %2250 = vmatpush2.bf16.msra.mxu0 %v2175
    %2251 = vmatprep.subr.bf16.mxu0 0
    %2252 = vmatpush2.bf16.msra.mxu0 %v2174
    %2253 = vmatprep.subr.bf16.mxu0 0
    %2254 = vmatpush2.bf16.msra.mxu0 %v2173
    %2255 = vmatprep.subr.bf16.mxu0 0
    %2256 = vmatpush2.bf16.msra.mxu0 %v2172
    %2257 = vmatprep.subr.bf16.mxu0 0
    %2258 = vmatpush2.bf16.msra.mxu0 %v2171
    %2259 = vmatprep.mubr.bf16.mxu0 %v1961
    %2260 = vmatmul.mubr.bf16.gmra.mxu0 %v1960
    %v2261 = vpop.f32.mrf.mxu0
    %v2262 = vadd.f32 %v2033, %v2261
    %v2263 = vpop.f32.mrf.mxu0
    %v2264 = vpop.f32.mrf.mxu0
    %v2265 = vpop.f32.mrf.mxu0
    %2266 = vdwg.mxu0
    %2267 = vmatprep.subr.bf16.mxu0 0
    %2268 = vmatpush1.bf16.msra.mxu0 %v2186
    %2269 = vmatprep.subr.bf16.mxu0 0
    %2270 = vmatpush1.bf16.msra.mxu0 %v2185
    %2271 = vmatprep.subr.bf16.mxu0 0
    %2272 = vmatpush1.bf16.msra.mxu0 %v2184
    %2273 = vmatprep.subr.bf16.mxu0 0
    %2274 = vmatpush1.bf16.msra.mxu0 %v2183
    %2275 = vmatprep.subr.bf16.mxu0 0
    %2276 = vmatpush1.bf16.msra.mxu0 %v2182
    %2277 = vmatprep.subr.bf16.mxu0 0
    %2278 = vmatpush1.bf16.msra.mxu0 %v2181
    %2279 = vmatprep.subr.bf16.mxu0 0
    %2280 = vmatpush1.bf16.msra.mxu0 %v2180
    %2281 = vmatprep.subr.bf16.mxu0 0
    %2282 = vmatpush1.bf16.msra.mxu0 %v2179
    %2283 = vmatprep.subr.bf16.mxu0 0
    %2284 = vmatpush2.bf16.msra.mxu0 %v2194
    %2285 = vmatprep.subr.bf16.mxu0 0
    %2286 = vmatpush2.bf16.msra.mxu0 %v2193
    %2287 = vmatprep.subr.bf16.mxu0 0
    %2288 = vmatpush2.bf16.msra.mxu0 %v2192
    %2289 = vmatprep.subr.bf16.mxu0 0
    %2290 = vmatpush2.bf16.msra.mxu0 %v2191
    %2291 = vmatprep.subr.bf16.mxu0 0
    %2292 = vmatpush2.bf16.msra.mxu0 %v2190
    %2293 = vmatprep.subr.bf16.mxu0 0
    %2294 = vmatpush2.bf16.msra.mxu0 %v2189
    %2295 = vmatprep.subr.bf16.mxu0 0
    %2296 = vmatpush2.bf16.msra.mxu0 %v2188
    %2297 = vmatprep.subr.bf16.mxu0 0
    %2298 = vmatpush2.bf16.msra.mxu0 %v2187
    %2299 = vmatprep.mubr.bf16.mxu0 %v1963
    %2300 = vmatmul.mubr.bf16.gmra.mxu0 %v1962
    %v2301 = vpop.f32.mrf.mxu0
    %v2302 = vadd.f32 %v2262, %v2301
    %v2303 = vpop.f32.mrf.mxu0
    %v2304 = vpop.f32.mrf.mxu0
    %v2305 = vpop.f32.mrf.mxu0
    %2306 = vdwg.mxu0
    %v2307 = vsub.f32 0.0, %v2302
    %v2308 = vmul.f32 %v2307, 1.442695
    %v2309 = vpow.pop %v2308
    %v2310 = vadd.f32 %v2309, 1.0
    %v2311 = vrcp.pop %v2310
    %v2312 = vpack.c.bf16 %v2311, %v2311
    %2313 = vst [vmem:[#allocation10] sm:$0xf] %v2312
    // Predicated region
    $region38: #{tpu_custom_call.1} parent=1 // pred_check
      _
    $region39: #{tpu_custom_call.1} parent=1 // pred_check_branch
      %2315 = sbr.rel (0) target = $region41
    $region40: #{tpu_custom_call.1} parent=1 // pred_region
      %s2317 = ssub.s32 64, 64
      %2318 = vsyncadd [#allocation4], %s2317
      %s2320 = sshll.u32 [#allocation10], 4
      %s2321 = int_to_ptr.vmem [resolvable:$true] %s2320
      %2323 = dma.vmem_to_hbm [thread:$0]  %s2321, 64, %s5, [#allocation4]
    $region41: #{tpu_custom_call.1} parent=1 // pred_fallthru
      _
    // Predicated region
    $region42: #{tpu_custom_call.1} parent=1 // pred_check
      _
    $region43: #{tpu_custom_call.1} parent=1 // pred_check_branch
      %2325 = sbr.rel (0) target = $region45
    $region44: #{tpu_custom_call.1} parent=1 // pred_region
      %2326 = dma.done [#allocation4], 64
    $region45: #{tpu_custom_call.1} parent=1 // pred_fallthru
      _
    %2327 = vsyncpa [#allocation3], 1
    %2328 = vsyncpa [#allocation6], 1
    %2329 = vsyncpa [#allocation9], 1
    %2330 = vsyncpa [#allocation4], 1

</llo_original>
